<compile_context>
chip_gen: v7x
topology: tpu7x:2x2x1
jax: 0.10.0
libtpu: 0.0.40
codegen_flags: <defaults>
</compile_context>

<pallas_src>
import jax
import jax.numpy as jnp
from jax.experimental import pallas as pl
from jax.experimental.pallas import tpu as pltpu

PLU_ALPHA = 0.1
PLU_C = 1.0


def _plu(x, alpha=PLU_ALPHA, c=PLU_C):
    # PLU(x) = max(alpha*(x+c) - c, min(alpha*(x-c) + c, x))
    return jnp.maximum(alpha * (x + c) - c, jnp.minimum(alpha * (x - c) + c, x))


def _round_up(v, m):
    return (v + m - 1) // m * m


def _disc_kernel(x_ref, w0_ref, w1_ref, w2_ref, b0_ref, b1_ref, b2_ref, out_ref):
    # x_ref  : (T_pad, Cp)  matmul dtype -- whole padded sequence of one batch
    # w0_ref : (L, Cp, Hp)  resident conv-0 taps
    # w1_ref : (Hp, H2p)    resident 1x1 conv
    # w2_ref : (Op, H2p)    resident 1x1 conv (output-major -> lane-dense store)
    # b0_ref : (1, Hp) f32 ; b1_ref : (1, H2p) f32 ; b2_ref : (Op, 1) f32
    # out_ref: (Op, TM) f32 -- time on lanes
    L = w0_ref.shape[0]
    Hp = w0_ref.shape[2]
    TM = out_ref.shape[1]

    t0 = pl.multiple_of(pl.program_id(1) * TM, TM)

    # conv0 (kernel_size = L) as L accumulated tap matmuls on the VMEM-resident
    # x block.  Tap slices are sublane-offset loads (cheap); bias is the
    # accumulator's initial value.
    acc = jnp.broadcast_to(b0_ref[...], (TM, Hp)).astype(jnp.float32)
    for l in range(L):                          # L is static -> unrolled
        xs = x_ref[pl.ds(t0 + l, TM), :]        # (TM, Cp)
        acc = acc + jnp.dot(xs, w0_ref[l], preferred_element_type=jnp.float32)
    h0 = _plu(acc)                              # (TM, Hp) f32

    h1 = jnp.dot(h0.astype(w1_ref.dtype), w1_ref[...],
                 preferred_element_type=jnp.float32) + b1_ref[...]
    h1 = _plu(h1)                               # (TM, H2p) f32

    # Final stage contracted as W2 @ h1^T so the result tile is (Op, TM):
    # the store is a wide unmasked vst instead of a narrow masked one.
    out = jax.lax.dot_general(
        w2_ref[...], h1.astype(w2_ref.dtype),
        dimension_numbers=(((1,), (1,)), ((), ())),
        preferred_element_type=jnp.float32)     # (Op, TM)
    out_ref[...] = out + b2_ref[...]


def long_motion_discriminator(x, params, length, *, block_t=256,
                              matmul_dtype=jnp.bfloat16):
    """x: (B, in_dim, T) f32 -> (B, out_dim, T - length + 1) f32."""
    w0, b0, w1, b1, w2, b2 = params  # torch: w0 (H,C,L), w1 (H2,H,1), w2 (O,H2,1)
    B, C, T = x.shape
    L = int(length)
    assert T >= L, "sequence shorter than conv kernel length"
    T_out = T - L + 1
    H, H2, O = w0.shape[0], w1.shape[0], w2.shape[0]

    # padded feature sizes (lane / sublane alignment)
    Cp = _round_up(C, 8)
    Hp = _round_up(H, 128)
    H2p = _round_up(H2, 128)
    Op = _round_up(O, 8)

    TM = max(128, min(block_t, _round_up(T_out, 128)))  # time tile, mult of 128
    n_t = pl.cdiv(T_out, TM)
    T_out_pad = n_t * TM
    T_pad = T_out_pad + L - 1       # every in-kernel tap window stays in bounds

    itemsize = jnp.dtype(matmul_dtype).itemsize

    # ---- layout glue (plain JAX, touches each element once) ----
    # x -> (B, T_pad, Cp): time on sublanes, channels on lanes.
    xt = jnp.transpose(x, (0, 2, 1))
    xp = jnp.pad(xt, ((0, 0), (0, T_pad - T), (0, Cp - C))).astype(matmul_dtype)

    w0m = jnp.pad(jnp.transpose(w0, (2, 1, 0)),
                  ((0, 0), (0, Cp - C), (0, Hp - H))).astype(matmul_dtype)  # (L,Cp,Hp)
    w1m = jnp.pad(jnp.transpose(w1[:, :, 0]),
                  ((0, Hp - H), (0, H2p - H2))).astype(matmul_dtype)        # (Hp,H2p)
    w2m = jnp.pad(w2[:, :, 0],
                  ((0, Op - O), (0, H2p - H2))).astype(matmul_dtype)        # (Op,H2p)
    b0m = jnp.pad(b0, (0, Hp - H)).reshape(1, Hp).astype(jnp.float32)
    b1m = jnp.pad(b1, (0, H2p - H2)).reshape(1, H2p).astype(jnp.float32)
    b2m = jnp.pad(b2, (0, Op - O)).reshape(Op, 1).astype(jnp.float32)

    # rough VMEM budget: x double-buffer + resident weights + out tiles + activations
    vmem_est = (2 * T_pad * Cp * itemsize
                + (L * Cp * Hp + Hp * H2p + Op * H2p) * itemsize
                + (Hp + H2p + Op) * 4
                + 2 * Op * TM * 4
                + (TM * Hp + TM * H2p + Op * TM) * 4)
    vmem_limit = int(min(64 * 2**20, max(16 * 2**20, 3 * vmem_est)))

    flops = 2 * B * T_out_pad * (L * Cp * Hp + Hp * H2p + H2p * Op)
    bytes_accessed = (B * T_pad * Cp * itemsize
                      + (L * Cp * Hp + Hp * H2p + Op * H2p) * itemsize
                      + (Hp + H2p + Op) * 4
                      + B * Op * T_out_pad * 4)

    out = pl.pallas_call(
        _disc_kernel,
        out_shape=jax.ShapeDtypeStruct((B, Op, T_out_pad), jnp.float32),
        grid=(B, n_t),
        in_specs=[
            pl.BlockSpec((None, T_pad, Cp), lambda b, j: (b, 0, 0)),  # x: per-batch resident
            pl.BlockSpec((L, Cp, Hp), lambda b, j: (0, 0, 0)),        # weights stay resident
            pl.BlockSpec((Hp, H2p), lambda b, j: (0, 0)),
            pl.BlockSpec((Op, H2p), lambda b, j: (0, 0)),
            pl.BlockSpec((1, Hp), lambda b, j: (0, 0)),
            pl.BlockSpec((1, H2p), lambda b, j: (0, 0)),
            pl.BlockSpec((Op, 1), lambda b, j: (0, 0)),
        ],
        out_specs=pl.BlockSpec((None, Op, TM), lambda b, j: (b, 0, j)),
        compiler_params=pltpu.CompilerParams(
            dimension_semantics=("parallel", "parallel"),
            vmem_limit_bytes=vmem_limit,
        ),
        cost_estimate=pl.CostEstimate(
            flops=int(flops), transcendentals=0,
            bytes_accessed=int(bytes_accessed)),
    )(xp, w0m, w1m, w2m, b0m, b1m, b2m)

    # drop feature / time padding; output already in (B, out_dim, T_out) layout
    return out[:, :O, :T_out]


def _reference(x, params, length):
    """Pure-JAX reference mirroring torch semantics (for correctness check)."""
    w0, b0, w1, b1, w2, b2 = params
    y = jax.lax.conv_general_dilated(
        x, w0, window_strides=(1,), padding="VALID",
        dimension_numbers=("NCH", "OIH", "NCH")) + b0[None, :, None]
    y = _plu(y)
    y = jax.lax.conv_general_dilated(
        y, w1, window_strides=(1,), padding="VALID",
        dimension_numbers=("NCH", "OIH", "NCH")) + b1[None, :, None]
    y = _plu(y)
    y = jax.lax.conv_general_dilated(
        y, w2, window_strides=(1,), padding="VALID",
        dimension_numbers=("NCH", "OIH", "NCH")) + b2[None, :, None]
    return y


def init_params(key, in_dim, hidden_dim, out_dim, length):
    ks = jax.random.split(key, 6)
    h2 = hidden_dim // 2
    w0 = 0.05 * jax.random.normal(ks[0], (hidden_dim, in_dim, length), jnp.float32)
    b0 = 0.01 * jax.random.normal(ks[1], (hidden_dim,), jnp.float32)
    w1 = 0.05 * jax.random.normal(ks[2], (h2, hidden_dim, 1), jnp.float32)
    b1 = 0.01 * jax.random.normal(ks[3], (h2,), jnp.float32)
    w2 = 0.05 * jax.random.normal(ks[4], (out_dim, h2, 1), jnp.float32)
    b2 = 0.01 * jax.random.normal(ks[5], (out_dim,), jnp.float32)
    return (w0, b0, w1, b1, w2, b2)


if __name__ == "__main__":
    key = jax.random.PRNGKey(0)
    B, in_dim, T = 2, 16, 16
    hidden_dim, out_dim, length = 32, 1, 4

    kx, kp = jax.random.split(key)
    x = jax.random.normal(kx, (B, in_dim, T), jnp.float32)
    params = init_params(kp, in_dim, hidden_dim, out_dim, length)

    ref = jax.block_until_ready(_reference(x, params, length))

    # f32 matmul path: must match the reference tightly.
    out_f32 = jax.block_until_ready(
        long_motion_discriminator(x, params, length, matmul_dtype=jnp.float32))
    assert out_f32.shape == (B, out_dim, T - length + 1), out_f32.shape
    assert jnp.allclose(out_f32, ref, atol=1e-4, rtol=1e-4), \
        float(jnp.max(jnp.abs(out_f32 - ref)))

    # default bf16 matmul path (MXU): f32 accumulation + f32 PLU keep the
    # error bounded by input rounding.
    out_bf16 = jax.block_until_ready(long_motion_discriminator(x, params, length))
    assert out_bf16.shape == (B, out_dim, T - length + 1), out_bf16.shape
    assert jnp.allclose(out_bf16, ref, atol=2e-2, rtol=2e-2), \
        float(jnp.max(jnp.abs(out_bf16 - ref)))

    print("KERNEL_OK")
</pallas_src>

<mosaic_0001>
module attributes {stable_mosaic.version = 11 : i64} {
  func.func @_disc_kernel(%arg0: i32, %arg1: i32, %arg2: memref<1x131x16xf32, #tpu.memory_space<vmem>>, %arg3: memref<4x16x128xf32, #tpu.memory_space<vmem>>, %arg4: memref<128x128xf32, #tpu.memory_space<vmem>>, %arg5: memref<8x128xf32, #tpu.memory_space<vmem>>, %arg6: memref<1x128xf32, #tpu.memory_space<vmem>>, %arg7: memref<1x128xf32, #tpu.memory_space<vmem>>, %arg8: memref<8x1xf32, #tpu.memory_space<vmem>>, %arg9: memref<1x8x128xf32, #tpu.memory_space<vmem>>) attributes {dimension_semantics = [#tpu.dimension_semantics<parallel>, #tpu.dimension_semantics<parallel>], iteration_bounds = array<i64: 2, 1>, scalar_prefetch = 0 : i64, scratch_operands = 0 : i64, tpu.core_type = #tpu.core_type<tc>, window_params = [{transform_indices = @transform_0, window_bounds = array<i64: 1, 131, 16>}, {pipeline_mode = #tpu.pipeline_mode<synchronous>, transform_indices = @transform_1, window_bounds = array<i64: 4, 16, 128>}, {pipeline_mode = #tpu.pipeline_mode<synchronous>, transform_indices = @transform_2, window_bounds = array<i64: 128, 128>}, {pipeline_mode = #tpu.pipeline_mode<synchronous>, transform_indices = @transform_3, window_bounds = array<i64: 8, 128>}, {pipeline_mode = #tpu.pipeline_mode<synchronous>, transform_indices = @transform_4, window_bounds = array<i64: 1, 128>}, {pipeline_mode = #tpu.pipeline_mode<synchronous>, transform_indices = @transform_5, window_bounds = array<i64: 1, 128>}, {pipeline_mode = #tpu.pipeline_mode<synchronous>, transform_indices = @transform_6, window_bounds = array<i64: 8, 1>}, {transform_indices = @transform_7, window_bounds = array<i64: 1, 8, 128>}]} {
    %c128_i32 = arith.constant 128 : i32
    %0 = arith.muli %arg1, %c128_i32 : i32
    %1 = tpu.assume_multiple %0, 128 : i32
    %c0 = arith.constant 0 : index
    %c0_0 = arith.constant 0 : index
    %2 = vector.load %arg6[%c0, %c0_0] : memref<1x128xf32, #tpu.memory_space<vmem>>, vector<1x128xf32>
    %3 = vector.shape_cast %2 : vector<1x128xf32> to vector<1x128xf32>
    %4 = vector.broadcast %3 : vector<1x128xf32> to vector<128x128xf32>
    %c0_i32 = arith.constant 0 : i32
    %5 = arith.addi %1, %c0_i32 : i32
    %c0_1 = arith.constant 0 : index
    %6 = arith.index_cast %5 : i32 to index
    %c0_2 = arith.constant 0 : index
    %7 = vector.load %arg2[%c0_1, %6, %c0_2] : memref<1x131x16xf32, #tpu.memory_space<vmem>>, vector<1x128x16xf32>
    %8 = vector.shape_cast %7 : vector<1x128x16xf32> to vector<128x16xf32>
    %c0_3 = arith.constant 0 : index
    %c0_4 = arith.constant 0 : index
    %c0_5 = arith.constant 0 : index
    %9 = vector.load %arg3[%c0_3, %c0_4, %c0_5] : memref<4x16x128xf32, #tpu.memory_space<vmem>>, vector<1x16x128xf32>
    %10 = vector.shape_cast %9 : vector<1x16x128xf32> to vector<16x128xf32>
    %cst = arith.constant dense<0.000000e+00> : vector<128x128xf32>
    %11 = tpu.matmul %8, %10, %cst {dimension_numbers = #tpu.dot_dimension_numbers<[1], [0], [0], [1], [0, 0, 1, 1], [], []>} : vector<128x16xf32>, vector<16x128xf32>, vector<128x128xf32> -> vector<128x128xf32>
    %12 = arith.addf %4, %11 : vector<128x128xf32>
    %c1_i32 = arith.constant 1 : i32
    %13 = arith.addi %1, %c1_i32 : i32
    %c0_6 = arith.constant 0 : index
    %14 = arith.index_cast %13 : i32 to index
    %c0_7 = arith.constant 0 : index
    %15 = vector.load %arg2[%c0_6, %14, %c0_7] : memref<1x131x16xf32, #tpu.memory_space<vmem>>, vector<1x128x16xf32>
    %16 = vector.shape_cast %15 : vector<1x128x16xf32> to vector<128x16xf32>
    %c1 = arith.constant 1 : index
    %c0_8 = arith.constant 0 : index
    %c0_9 = arith.constant 0 : index
    %17 = vector.load %arg3[%c1, %c0_8, %c0_9] : memref<4x16x128xf32, #tpu.memory_space<vmem>>, vector<1x16x128xf32>
    %18 = vector.shape_cast %17 : vector<1x16x128xf32> to vector<16x128xf32>
    %cst_10 = arith.constant dense<0.000000e+00> : vector<128x128xf32>
    %19 = tpu.matmul %16, %18, %cst_10 {dimension_numbers = #tpu.dot_dimension_numbers<[1], [0], [0], [1], [0, 0, 1, 1], [], []>} : vector<128x16xf32>, vector<16x128xf32>, vector<128x128xf32> -> vector<128x128xf32>
    %20 = arith.addf %12, %19 : vector<128x128xf32>
    %c2_i32 = arith.constant 2 : i32
    %21 = arith.addi %1, %c2_i32 : i32
    %c0_11 = arith.constant 0 : index
    %22 = arith.index_cast %21 : i32 to index
    %c0_12 = arith.constant 0 : index
    %23 = vector.load %arg2[%c0_11, %22, %c0_12] : memref<1x131x16xf32, #tpu.memory_space<vmem>>, vector<1x128x16xf32>
    %24 = vector.shape_cast %23 : vector<1x128x16xf32> to vector<128x16xf32>
    %c2 = arith.constant 2 : index
    %c0_13 = arith.constant 0 : index
    %c0_14 = arith.constant 0 : index
    %25 = vector.load %arg3[%c2, %c0_13, %c0_14] : memref<4x16x128xf32, #tpu.memory_space<vmem>>, vector<1x16x128xf32>
    %26 = vector.shape_cast %25 : vector<1x16x128xf32> to vector<16x128xf32>
    %cst_15 = arith.constant dense<0.000000e+00> : vector<128x128xf32>
    %27 = tpu.matmul %24, %26, %cst_15 {dimension_numbers = #tpu.dot_dimension_numbers<[1], [0], [0], [1], [0, 0, 1, 1], [], []>} : vector<128x16xf32>, vector<16x128xf32>, vector<128x128xf32> -> vector<128x128xf32>
    %28 = arith.addf %20, %27 : vector<128x128xf32>
    %c3_i32 = arith.constant 3 : i32
    %29 = arith.addi %1, %c3_i32 : i32
    %c0_16 = arith.constant 0 : index
    %30 = arith.index_cast %29 : i32 to index
    %c0_17 = arith.constant 0 : index
    %31 = vector.load %arg2[%c0_16, %30, %c0_17] : memref<1x131x16xf32, #tpu.memory_space<vmem>>, vector<1x128x16xf32>
    %32 = vector.shape_cast %31 : vector<1x128x16xf32> to vector<128x16xf32>
    %c3 = arith.constant 3 : index
    %c0_18 = arith.constant 0 : index
    %c0_19 = arith.constant 0 : index
    %33 = vector.load %arg3[%c3, %c0_18, %c0_19] : memref<4x16x128xf32, #tpu.memory_space<vmem>>, vector<1x16x128xf32>
    %34 = vector.shape_cast %33 : vector<1x16x128xf32> to vector<16x128xf32>
    %cst_20 = arith.constant dense<0.000000e+00> : vector<128x128xf32>
    %35 = tpu.matmul %32, %34, %cst_20 {dimension_numbers = #tpu.dot_dimension_numbers<[1], [0], [0], [1], [0, 0, 1, 1], [], []>} : vector<128x16xf32>, vector<16x128xf32>, vector<128x128xf32> -> vector<128x128xf32>
    %36 = arith.addf %28, %35 : vector<128x128xf32>
    %cst_21 = arith.constant 1.000000e+00 : f32
    %37 = vector.broadcast %cst_21 : f32 to vector<128x128xf32>
    %38 = arith.addf %36, %37 : vector<128x128xf32>
    %cst_22 = arith.constant 1.000000e-01 : f32
    %39 = vector.broadcast %cst_22 : f32 to vector<128x128xf32>
    %40 = arith.mulf %39, %38 : vector<128x128xf32>
    %cst_23 = arith.constant 1.000000e+00 : f32
    %41 = vector.broadcast %cst_23 : f32 to vector<128x128xf32>
    %42 = arith.subf %40, %41 : vector<128x128xf32>
    %cst_24 = arith.constant 1.000000e+00 : f32
    %43 = vector.broadcast %cst_24 : f32 to vector<128x128xf32>
    %44 = arith.subf %36, %43 : vector<128x128xf32>
    %cst_25 = arith.constant 1.000000e-01 : f32
    %45 = vector.broadcast %cst_25 : f32 to vector<128x128xf32>
    %46 = arith.mulf %45, %44 : vector<128x128xf32>
    %cst_26 = arith.constant 1.000000e+00 : f32
    %47 = vector.broadcast %cst_26 : f32 to vector<128x128xf32>
    %48 = arith.addf %46, %47 : vector<128x128xf32>
    %49 = arith.minimumf %48, %36 : vector<128x128xf32>
    %50 = arith.maximumf %42, %49 : vector<128x128xf32>
    %c0_27 = arith.constant 0 : index
    %c0_28 = arith.constant 0 : index
    %51 = vector.load %arg4[%c0_27, %c0_28] : memref<128x128xf32, #tpu.memory_space<vmem>>, vector<128x128xf32>
    %cst_29 = arith.constant dense<0.000000e+00> : vector<128x128xf32>
    %52 = tpu.matmul %50, %51, %cst_29 {dimension_numbers = #tpu.dot_dimension_numbers<[1], [0], [0], [1], [0, 0, 1, 1], [], []>} : vector<128x128xf32>, vector<128x128xf32>, vector<128x128xf32> -> vector<128x128xf32>
    %c0_30 = arith.constant 0 : index
    %c0_31 = arith.constant 0 : index
    %53 = vector.load %arg7[%c0_30, %c0_31] : memref<1x128xf32, #tpu.memory_space<vmem>>, vector<1x128xf32>
    %54 = vector.broadcast %53 : vector<1x128xf32> to vector<128x128xf32>
    %55 = arith.addf %52, %54 : vector<128x128xf32>
    %cst_32 = arith.constant 1.000000e+00 : f32
    %56 = vector.broadcast %cst_32 : f32 to vector<128x128xf32>
    %57 = arith.addf %55, %56 : vector<128x128xf32>
    %cst_33 = arith.constant 1.000000e-01 : f32
    %58 = vector.broadcast %cst_33 : f32 to vector<128x128xf32>
    %59 = arith.mulf %58, %57 : vector<128x128xf32>
    %cst_34 = arith.constant 1.000000e+00 : f32
    %60 = vector.broadcast %cst_34 : f32 to vector<128x128xf32>
    %61 = arith.subf %59, %60 : vector<128x128xf32>
    %cst_35 = arith.constant 1.000000e+00 : f32
    %62 = vector.broadcast %cst_35 : f32 to vector<128x128xf32>
    %63 = arith.subf %55, %62 : vector<128x128xf32>
    %cst_36 = arith.constant 1.000000e-01 : f32
    %64 = vector.broadcast %cst_36 : f32 to vector<128x128xf32>
    %65 = arith.mulf %64, %63 : vector<128x128xf32>
    %cst_37 = arith.constant 1.000000e+00 : f32
    %66 = vector.broadcast %cst_37 : f32 to vector<128x128xf32>
    %67 = arith.addf %65, %66 : vector<128x128xf32>
    %68 = arith.minimumf %67, %55 : vector<128x128xf32>
    %69 = arith.maximumf %61, %68 : vector<128x128xf32>
    %c0_38 = arith.constant 0 : index
    %c0_39 = arith.constant 0 : index
    %70 = vector.load %arg5[%c0_38, %c0_39] : memref<8x128xf32, #tpu.memory_space<vmem>>, vector<8x128xf32>
    %cst_40 = arith.constant dense<0.000000e+00> : vector<8x128xf32>
    %71 = tpu.matmul %70, %69, %cst_40 {dimension_numbers = #tpu.dot_dimension_numbers<[1], [1], [0], [0], [0, 0, 1, 0], [], []>} : vector<8x128xf32>, vector<128x128xf32>, vector<8x128xf32> -> vector<8x128xf32>
    %c0_41 = arith.constant 0 : index
    %c0_42 = arith.constant 0 : index
    %72 = vector.load %arg8[%c0_41, %c0_42] : memref<8x1xf32, #tpu.memory_space<vmem>>, vector<8x1xf32>
    %73 = vector.broadcast %72 : vector<8x1xf32> to vector<8x128xf32>
    %74 = arith.addf %71, %73 : vector<8x128xf32>
    %c0_43 = arith.constant 0 : index
    %c0_44 = arith.constant 0 : index
    %c0_45 = arith.constant 0 : index
    %75 = vector.load %arg9[%c0_43, %c0_44, %c0_45] : memref<1x8x128xf32, #tpu.memory_space<vmem>>, vector<1x8x128xf32>
    %76 = vector.shape_cast %75 : vector<1x8x128xf32> to vector<8x128xf32>
    %77 = vector.shape_cast %74 : vector<8x128xf32> to vector<1x8x128xf32>
    tpu.vector_store %arg9[%c0_43, %c0_44, %c0_45], %77 {strides = array<i32>} : memref<1x8x128xf32, #tpu.memory_space<vmem>>, vector<1x8x128xf32>,
    return
  }
  func.func @transform_0(%arg0: i32, %arg1: i32) -> (i32, i32, i32) {
    %c0_i32 = arith.constant 0 : i32
    %c0_i32_0 = arith.constant 0 : i32
    %c0_i32_1 = arith.constant 0 : i32
    return %arg0, %c0_i32, %c0_i32_0 : i32, i32, i32
  }
  func.func @transform_1(%arg0: i32, %arg1: i32) -> (i32, i32, i32) {
    %c0_i32 = arith.constant 0 : i32
    %c0_i32_0 = arith.constant 0 : i32
    %c0_i32_1 = arith.constant 0 : i32
    %c0_i32_2 = arith.constant 0 : i32
    return %c0_i32, %c0_i32_0, %c0_i32_1 : i32, i32, i32
  }
  func.func @transform_2(%arg0: i32, %arg1: i32) -> (i32, i32) {
    %c0_i32 = arith.constant 0 : i32
    %c0_i32_0 = arith.constant 0 : i32
    %c0_i32_1 = arith.constant 0 : i32
    return %c0_i32, %c0_i32_0 : i32, i32
  }
  func.func @transform_3(%arg0: i32, %arg1: i32) -> (i32, i32) {
    %c0_i32 = arith.constant 0 : i32
    %c0_i32_0 = arith.constant 0 : i32
    %c0_i32_1 = arith.constant 0 : i32
    return %c0_i32, %c0_i32_0 : i32, i32
  }
  func.func @transform_4(%arg0: i32, %arg1: i32) -> (i32, i32) {
    %c0_i32 = arith.constant 0 : i32
    %c0_i32_0 = arith.constant 0 : i32
    %c0_i32_1 = arith.constant 0 : i32
    return %c0_i32, %c0_i32_0 : i32, i32
  }
  func.func @transform_5(%arg0: i32, %arg1: i32) -> (i32, i32) {
    %c0_i32 = arith.constant 0 : i32
    %c0_i32_0 = arith.constant 0 : i32
    %c0_i32_1 = arith.constant 0 : i32
    return %c0_i32, %c0_i32_0 : i32, i32
  }
  func.func @transform_6(%arg0: i32, %arg1: i32) -> (i32, i32) {
    %c0_i32 = arith.constant 0 : i32
    %c0_i32_0 = arith.constant 0 : i32
    %c0_i32_1 = arith.constant 0 : i32
    return %c0_i32, %c0_i32_0 : i32, i32
  }
  func.func @transform_7(%arg0: i32, %arg1: i32) -> (i32, i32, i32) {
    %c0_i32 = arith.constant 0 : i32
    %c0_i32_0 = arith.constant 0 : i32
    return %arg0, %c0_i32, %arg1 : i32, i32, i32
  }
}

</mosaic_0001>

<llo_original>
// kernel: tpu_custom_call.1
$region0: #{tpu_custom_call.1}
  #allocation0 [shape = 'u32[]', space=smem, size = 0x4, offset = 0x4, fixed_abs, tag = 'smem constant byte address 0x4 - core index']
  #allocation1 [shape = 'u32[144,128]{1,0:T(1,128)}', space=vmem, size = 0x12000, scoped, tag = 'internal scratch']
  %s0 = inlined_call_operand.vmem [shape: f32[2,131,16], index: 0, kind: input, shape index: {}]
  %s1 = inlined_call_operand.vmem [shape: f32[4,16,128], index: 1, kind: input, shape index: {}]
  %s2 = inlined_call_operand.vmem [shape: f32[128,128], index: 2, kind: input, shape index: {}]
  %s3 = inlined_call_operand.vmem [shape: f32[8,128], index: 3, kind: input, shape index: {}]
  %s4 = inlined_call_operand.vmem [shape: f32[1,128], index: 4, kind: input, shape index: {}]
  %s5 = inlined_call_operand.vmem [shape: f32[1,128], index: 5, kind: input, shape index: {}]
  %s6 = inlined_call_operand.vmem [shape: f32[8,1], index: 6, kind: input, shape index: {}]
  %s7 = inlined_call_operand.hbm [shape: f32[2,8,128], index: 7, kind: output, shape index: {}]
  %s8 = sld [smem:[#allocation0]]
  $region61: #{tpu_custom_call.1} parent=0
    _
  %s10 = ssub.s32 1, %s8
  %s11 = scalar_select 0, %s10, %s8
  $region1: #{tpu_custom_call.1} parent=0
    #allocation2 [shape = 'u8[8192]{0}', space=vmem, size = 0x2000, scoped, tag = 'output window, operand 0']
    #allocation3 [shape = 's32[2]{0}', space=sflag, size = 0x8, scoped, tag = 'scoped memory for tpu_custom_call.1']
    %12 = vsyncpa [#allocation3], 0
    %s13 = scalar_lea.sflag [#allocation3], 1
    %14 = vsyncpa %s13, 0
    loop: start=0, step=1, limit=4
    $region2: #{tpu_custom_call.1} parent=1 // loop_pre_header
      _
    $region3: #{tpu_custom_call.1} parent=1 // loop_header
      %s16 = sphi 0, %s20
      %p17 = scmp.ge.s32.totalorder %s16, 4
      %s23 = sphi 0, %s35
      %s24 = sphi 0, %s31
      %s25 = sphi 0, %s23
      %s26 = sphi 0, %s24
      %s27 = sphi 0, %s25
      %s28 = sphi 0, %s26
      %s38 = sphi 0, %s40
      %s41 = sphi 0, %s38
      %s42 = sphi 0, %s41
      %s58 = sphi 0, %s42
      %s62 = sphi 0, %s62
      %s64 = sphi 0, %s62
      %s65 = sphi 0, %s64
      %s79 = sphi 0, %s65
      %s83 = sphi 0, %s83
      %s85 = sphi 0, %s83
      %s86 = sphi 0, %s85
      %s100 = sphi 0, %s86
      %s104 = sphi 0, %s104
      %s106 = sphi 0, %s104
      %s107 = sphi 0, %s106
      %s121 = sphi 0, %s107
      %s125 = sphi 0, %s125
      %s127 = sphi 0, %s125
      %s128 = sphi 0, %s127
      %s142 = sphi 0, %s128
      %s146 = sphi 0, %s146
      %s148 = sphi 0, %s146
      %s149 = sphi 0, %s148
      %s163 = sphi 0, %s149
      %s167 = sphi 0, %s167
      %s169 = sphi 0, %s167
      %s170 = sphi 0, %s169
      %s184 = sphi 0, %s170
      %s192 = sphi 0, %s194
      %s195 = sphi 0, %s192
      %s196 = sphi 0, %s195
      %s212 = sphi 0, %s196
    $region4: #{tpu_custom_call.1} parent=1 // loop_header_branch
      %19 = sbr.rel (%p17) target = $region8
    $region5: #{tpu_custom_call.1} parent=1 // loop_body
      %s21 = ssub.s32 %s16, 1
      %s22 = ssub.s32 %s16, 2
      %s29 = sadd.s32 1, %s24
      %p30 = scmp.ge.s32.totalorder %s29, 1
      %s31 = scalar_select %p30, 0, %s29
      %s32 = sadd.s32 1, %s23
      %s33 = scalar_select %p30, %s32, %s23
      %p34 = scmp.ge.s32.totalorder %s33, 2
      %s35 = scalar_select %p34, 0, %s33
      %s36 = ssub.s32 %s23, %s35
      %p37 = scmp.eq.s32.totalorder %s36, 0
      %s39 = sadd.s32 %s38, 1
      %s40 = scalar_select %p37, %s38, %s39
      %p43 = pneg %p37
      %p44 = scmp.eq.s32.totalorder %s16, 1
      %p45 = por %p43, %p44
      %p46 = scmp.ne.s32.totalorder %s38, %s41
      %p47 = scmp.eq.s32.totalorder %s16, 0
      %p48 = por %p46, %p47
      %p49 = scmp.ne.s32.totalorder %s38, %s41
      %p50 = scmp.eq.s32.totalorder %s21, 1
      %p51 = por %p49, %p50
      %p52 = scmp.ne.s32.totalorder %s41, %s42
      %p53 = scmp.eq.s32.totalorder %s21, 0
      %p54 = por %p52, %p53
      %p55 = scmp.ne.s32.totalorder %s41, %s42
      %p56 = scmp.eq.s32.totalorder %s22, 1
      %p57 = por %p55, %p56
      %p59 = scmp.ne.s32.totalorder %s42, %s58
      %p60 = scmp.eq.s32.totalorder %s22, 0
      %p61 = por %p59, %p60
      %s63 = sadd.s32 %s62, 1
      %p66 = scmp.eq.s32.totalorder %s16, 1
      %p67 = scmp.ne.s32.totalorder %s62, %s64
      %p68 = scmp.eq.s32.totalorder %s16, 0
      %p69 = por %p67, %p68
      %p70 = scmp.ne.s32.totalorder %s62, %s64
      %p71 = scmp.eq.s32.totalorder %s21, 1
      %p72 = por %p70, %p71
      %p73 = scmp.ne.s32.totalorder %s64, %s65
      %p74 = scmp.eq.s32.totalorder %s21, 0
      %p75 = por %p73, %p74
      %p76 = scmp.ne.s32.totalorder %s64, %s65
      %p77 = scmp.eq.s32.totalorder %s22, 1
      %p78 = por %p76, %p77
      %p80 = scmp.ne.s32.totalorder %s65, %s79
      %p81 = scmp.eq.s32.totalorder %s22, 0
      %p82 = por %p80, %p81
      %s84 = sadd.s32 %s83, 1
      %p87 = scmp.eq.s32.totalorder %s16, 1
      %p88 = scmp.ne.s32.totalorder %s83, %s85
      %p89 = scmp.eq.s32.totalorder %s16, 0
      %p90 = por %p88, %p89
      %p91 = scmp.ne.s32.totalorder %s83, %s85
      %p92 = scmp.eq.s32.totalorder %s21, 1
      %p93 = por %p91, %p92
      %p94 = scmp.ne.s32.totalorder %s85, %s86
      %p95 = scmp.eq.s32.totalorder %s21, 0
      %p96 = por %p94, %p95
      %p97 = scmp.ne.s32.totalorder %s85, %s86
      %p98 = scmp.eq.s32.totalorder %s22, 1
      %p99 = por %p97, %p98
      %p101 = scmp.ne.s32.totalorder %s86, %s100
      %p102 = scmp.eq.s32.totalorder %s22, 0
      %p103 = por %p101, %p102
      %s105 = sadd.s32 %s104, 1
      %p108 = scmp.eq.s32.totalorder %s16, 1
      %p109 = scmp.ne.s32.totalorder %s104, %s106
      %p110 = scmp.eq.s32.totalorder %s16, 0
      %p111 = por %p109, %p110
      %p112 = scmp.ne.s32.totalorder %s104, %s106
      %p113 = scmp.eq.s32.totalorder %s21, 1
      %p114 = por %p112, %p113
      %p115 = scmp.ne.s32.totalorder %s106, %s107
      %p116 = scmp.eq.s32.totalorder %s21, 0
      %p117 = por %p115, %p116
      %p118 = scmp.ne.s32.totalorder %s106, %s107
      %p119 = scmp.eq.s32.totalorder %s22, 1
      %p120 = por %p118, %p119
      %p122 = scmp.ne.s32.totalorder %s107, %s121
      %p123 = scmp.eq.s32.totalorder %s22, 0
      %p124 = por %p122, %p123
      %s126 = sadd.s32 %s125, 1
      %p129 = scmp.eq.s32.totalorder %s16, 1
      %p130 = scmp.ne.s32.totalorder %s125, %s127
      %p131 = scmp.eq.s32.totalorder %s16, 0
      %p132 = por %p130, %p131
      %p133 = scmp.ne.s32.totalorder %s125, %s127
      %p134 = scmp.eq.s32.totalorder %s21, 1
      %p135 = por %p133, %p134
      %p136 = scmp.ne.s32.totalorder %s127, %s128
      %p137 = scmp.eq.s32.totalorder %s21, 0
      %p138 = por %p136, %p137
      %p139 = scmp.ne.s32.totalorder %s127, %s128
      %p140 = scmp.eq.s32.totalorder %s22, 1
      %p141 = por %p139, %p140
      %p143 = scmp.ne.s32.totalorder %s128, %s142
      %p144 = scmp.eq.s32.totalorder %s22, 0
      %p145 = por %p143, %p144
      %s147 = sadd.s32 %s146, 1
      %p150 = scmp.eq.s32.totalorder %s16, 1
      %p151 = scmp.ne.s32.totalorder %s146, %s148
      %p152 = scmp.eq.s32.totalorder %s16, 0
      %p153 = por %p151, %p152
      %p154 = scmp.ne.s32.totalorder %s146, %s148
      %p155 = scmp.eq.s32.totalorder %s21, 1
      %p156 = por %p154, %p155
      %p157 = scmp.ne.s32.totalorder %s148, %s149
      %p158 = scmp.eq.s32.totalorder %s21, 0
      %p159 = por %p157, %p158
      %p160 = scmp.ne.s32.totalorder %s148, %s149
      %p161 = scmp.eq.s32.totalorder %s22, 1
      %p162 = por %p160, %p161
      %p164 = scmp.ne.s32.totalorder %s149, %s163
      %p165 = scmp.eq.s32.totalorder %s22, 0
      %p166 = por %p164, %p165
      %s168 = sadd.s32 %s167, 1
      %p171 = scmp.eq.s32.totalorder %s16, 1
      %p172 = scmp.ne.s32.totalorder %s167, %s169
      %p173 = scmp.eq.s32.totalorder %s16, 0
      %p174 = por %p172, %p173
      %p175 = scmp.ne.s32.totalorder %s167, %s169
      %p176 = scmp.eq.s32.totalorder %s21, 1
      %p177 = por %p175, %p176
      %p178 = scmp.ne.s32.totalorder %s169, %s170
      %p179 = scmp.eq.s32.totalorder %s21, 0
      %p180 = por %p178, %p179
      %p181 = scmp.ne.s32.totalorder %s169, %s170
      %p182 = scmp.eq.s32.totalorder %s22, 1
      %p183 = por %p181, %p182
      %p185 = scmp.ne.s32.totalorder %s170, %s184
      %p186 = scmp.eq.s32.totalorder %s22, 0
      %p187 = por %p185, %p186
      %s188 = ssub.s32 %s23, %s35
      %s189 = ssub.s32 %s24, %s31
      %s190 = sor.u32 %s188, %s189
      %p191 = scmp.eq.s32.totalorder %s190, 0
      %s193 = sadd.s32 %s192, 1
      %s194 = scalar_select %p191, %s192, %s193
      %p197 = pneg %p191
      %p198 = scmp.eq.s32.totalorder %s16, 1
      %p199 = por %p197, %p198
      %p200 = scmp.ne.s32.totalorder %s192, %s195
      %p201 = scmp.eq.s32.totalorder %s16, 0
      %p202 = por %p200, %p201
      %p203 = scmp.ne.s32.totalorder %s192, %s195
      %p204 = scmp.eq.s32.totalorder %s21, 1
      %p205 = por %p203, %p204
      %p206 = scmp.ne.s32.totalorder %s195, %s196
      %p207 = scmp.eq.s32.totalorder %s21, 0
      %p208 = por %p206, %p207
      %p209 = scmp.ne.s32.totalorder %s195, %s196
      %p210 = scmp.eq.s32.totalorder %s22, 1
      %p211 = por %p209, %p210
      %p213 = scmp.ne.s32.totalorder %s196, %s212
      %p214 = scmp.eq.s32.totalorder %s22, 0
      %p215 = por %p213, %p214
      %p216 = scmp.le.s32.totalorder 1, %s16
      %p217 = scmp.lt.s32.totalorder %s16, 3
      %p218 = pnand %p216, %p217
      %p219 = pneg %p218
      // Predicated region
      $region9: #{tpu_custom_call.1} parent=5 // pred_check
        _
      $region10: #{tpu_custom_call.1} parent=5 // pred_check_branch
        %221 = sbr.rel (%p218) target = $region12
      $region11: #{tpu_custom_call.1} parent=5 // pred_region
        %s222 = ssub.s32 %s16, 1
        // Predicated region
        $region13: #{tpu_custom_call.1} parent=11 // pred_check
          %p223 = pneg %p75
        $region14: #{tpu_custom_call.1} parent=11 // pred_check_branch
          %225 = sbr.rel (%p223) target = $region16
        $region15: #{tpu_custom_call.1} parent=11 // pred_region
          _
        $region16: #{tpu_custom_call.1} parent=11 // pred_fallthru
          _
        // Predicated region
        $region17: #{tpu_custom_call.1} parent=11 // pred_check
          %p226 = pneg %p96
        $region18: #{tpu_custom_call.1} parent=11 // pred_check_branch
          %228 = sbr.rel (%p226) target = $region20
        $region19: #{tpu_custom_call.1} parent=11 // pred_region
          _
        $region20: #{tpu_custom_call.1} parent=11 // pred_fallthru
          _
        // Predicated region
        $region21: #{tpu_custom_call.1} parent=11 // pred_check
          %p229 = pneg %p117
        $region22: #{tpu_custom_call.1} parent=11 // pred_check_branch
          %231 = sbr.rel (%p229) target = $region24
        $region23: #{tpu_custom_call.1} parent=11 // pred_region
          _
        $region24: #{tpu_custom_call.1} parent=11 // pred_fallthru
          _
        // Predicated region
        $region25: #{tpu_custom_call.1} parent=11 // pred_check
          %p232 = pneg %p138
        $region26: #{tpu_custom_call.1} parent=11 // pred_check_branch
          %234 = sbr.rel (%p232) target = $region28
        $region27: #{tpu_custom_call.1} parent=11 // pred_region
          _
        $region28: #{tpu_custom_call.1} parent=11 // pred_fallthru
          _
        // Predicated region
        $region29: #{tpu_custom_call.1} parent=11 // pred_check
          %p235 = pneg %p159
        $region30: #{tpu_custom_call.1} parent=11 // pred_check_branch
          %237 = sbr.rel (%p235) target = $region32
        $region31: #{tpu_custom_call.1} parent=11 // pred_region
          _
        $region32: #{tpu_custom_call.1} parent=11 // pred_fallthru
          _
        // Predicated region
        $region33: #{tpu_custom_call.1} parent=11 // pred_check
          %p238 = pneg %p180
        $region34: #{tpu_custom_call.1} parent=11 // pred_check_branch
          %240 = sbr.rel (%p238) target = $region36
        $region35: #{tpu_custom_call.1} parent=11 // pred_region
          _
        $region36: #{tpu_custom_call.1} parent=11 // pred_fallthru
          _
      $region12: #{tpu_custom_call.1} parent=5 // pred_fallthru
        _
      %p241 = scmp.lt.s32.totalorder %s16, 2
      // Predicated region
      $region37: #{tpu_custom_call.1} parent=5 // pred_check
        %p242 = pneg %p241
      $region38: #{tpu_custom_call.1} parent=5 // pred_check_branch
        %244 = sbr.rel (%p242) target = $region40
      $region39: #{tpu_custom_call.1} parent=5 // pred_region
        // Predicated region
        $region41: #{tpu_custom_call.1} parent=39 // pred_check
          %p245 = pneg %p48
        $region42: #{tpu_custom_call.1} parent=39 // pred_check_branch
          %247 = sbr.rel (%p245) target = $region44
        $region43: #{tpu_custom_call.1} parent=39 // pred_region
          %p248 = scmp.lt.s32.totalorder %s23, 1
          %s249 = scalar_select %p248, %s23, 1
          %s250 = smul.addr %s249, 17
          %s251 = smul.addr %s250, 8
          %s252 = scalar_lea.vmem %s0, %s251
        $region44: #{tpu_custom_call.1} parent=39 // pred_fallthru
          _
      $region40: #{tpu_custom_call.1} parent=5 // pred_fallthru
        _
      %p253 = scmp.le.s32.totalorder 1, %s16
      %p254 = scmp.lt.s32.totalorder %s16, 3
      %p255 = pnand %p253, %p254
      %p256 = pneg %p255
      // Predicated region
      $region45: #{tpu_custom_call.1} parent=5 // pred_check
        _
      $region46: #{tpu_custom_call.1} parent=5 // pred_check_branch
        %258 = sbr.rel (%p255) target = $region48
      $region47: #{tpu_custom_call.1} parent=5 // pred_region
        %s259 = ssub.s32 %s16, 1
        %p260 = scmp.lt.s32.totalorder %s25, 1
        %s261 = scalar_select %p260, %s25, 1
        %s262 = smul.addr %s261, 17
        %s263 = smul.addr %s262, 8
        %s264 = scalar_lea.vmem %s0, %s263
        %p265 = pneg %p54
        %p266 = pneg %p51
        %p267 = pneg %p75
        %p268 = pneg %p72
        %p269 = pneg %p96
        %p270 = pneg %p93
        %p271 = pneg %p117
        %p272 = pneg %p114
        %p273 = pneg %p138
        %p274 = pneg %p135
        %p275 = pneg %p159
        %p276 = pneg %p156
        %p277 = pneg %p180
        %p278 = pneg %p177
        %p279 = pneg %p208
        %p280 = pneg %p205
        %s281 = sand.u32 %s195, 1
        %s282 = scalar_lea.sflag [#allocation3], %s281
        %s283 = sand.u32 %s195, 1
        %s284 = smul.addr %s283, 8
        %s285 = scalar_lea.vmem [#allocation2], %s284
        %p286 = scmp.lt.s32.totalorder %s25, 1
        %s287 = scalar_select %p286, %s25, 1
        %s288 = smul.addr %s287, 17
        %s289 = smul.addr %s288, 8
        %s290 = scalar_lea.vmem %s0, %s289
        %s291 = smul.u32 %s26, 128
        %v292 = vld [vmem:[%s4] sm:$0x1]
        %v294 = vlaneseq
        %v295 = vshrl.u32 %v294, 7
        %v296 = vsub.s32 0, %v295
        %v297 = vrot.slane %v292, %v296
        %s299 = scalar_lea.vmem %s290, %s291
        %v300 = vld [vmem:[%s299] sm:$0xff]
        %v301 = vld [vmem:[%s299 + $0x8] sm:$0xff]
        %v302 = vld [vmem:[%s299 + $0x10] sm:$0xff]
        %v303 = vld [vmem:[%s299 + $0x18] sm:$0xff]
        %v304 = vld [vmem:[%s299 + $0x20] sm:$0xff]
        %v305 = vld [vmem:[%s299 + $0x28] sm:$0xff]
        %v306 = vld [vmem:[%s299 + $0x30] sm:$0xff]
        %v307 = vld [vmem:[%s299 + $0x38] sm:$0xff]
        %v308 = vld [vmem:[%s299 + $0x40] sm:$0xff]
        %v309 = vld [vmem:[%s299 + $0x48] sm:$0xff]
        %v310 = vld [vmem:[%s299 + $0x50] sm:$0xff]
        %v311 = vld [vmem:[%s299 + $0x58] sm:$0xff]
        %v312 = vld [vmem:[%s299 + $0x60] sm:$0xff]
        %v313 = vld [vmem:[%s299 + $0x68] sm:$0xff]
        %v314 = vld [vmem:[%s299 + $0x70] sm:$0xff]
        %v315 = vld [vmem:[%s299 + $0x78] sm:$0xff]
        %v316 = vld [vmem:[%s1] sm:$0xff]
        %v317 = vld [vmem:[%s1 + $0x8] sm:$0xff]
        %vm318 = vcmask 130048
        %v320 = vsel %vm318, %v300, 0
        %v323 = vsel %vm318, %v301, 0
        %v326 = vsel %vm318, %v302, 0
        %v329 = vsel %vm318, %v303, 0
        %v332 = vsel %vm318, %v304, 0
        %v335 = vsel %vm318, %v305, 0
        %v338 = vsel %vm318, %v306, 0
        %v341 = vsel %vm318, %v307, 0
        %v344 = vsel %vm318, %v308, 0
        %v347 = vsel %vm318, %v309, 0
        %v350 = vsel %vm318, %v310, 0
        %v353 = vsel %vm318, %v311, 0
        %v356 = vsel %vm318, %v312, 0
        %v359 = vsel %vm318, %v313, 0
        %v362 = vsel %vm318, %v314, 0
        %v365 = vsel %vm318, %v315, 0
        %367 = vmatprep.subr.mxu0 0.0
        %368 = vmatpush1.msra.mxu0 %v316
        %369 = vmatprep.subr.mxu0 0.0
        %370 = vmatpush1.msra.mxu0 %v317
        %371 = vmatprep.subr.mxu0 0.0
        %372 = vmatpush1.msra.mxu0 0.0
        %373 = vmatprep.subr.mxu0 0.0
        %374 = vmatpush1.msra.mxu0 0.0
        %375 = vmatprep.subr.mxu0 0.0
        %376 = vmatpush1.msra.mxu0 0.0
        %377 = vmatprep.subr.mxu0 0.0
        %378 = vmatpush1.msra.mxu0 0.0
        %379 = vmatprep.subr.mxu0 0.0
        %380 = vmatpush1.msra.mxu0 0.0
        %381 = vmatprep.subr.mxu0 0.0
        %382 = vmatpush1.msra.mxu0 0.0
        %383 = vmatprep.subr.mxu0 0.0
        %384 = vmatpush1.msra.mxu0 0.0
        %385 = vmatprep.subr.mxu0 0.0
        %386 = vmatpush1.msra.mxu0 0.0
        %387 = vmatprep.subr.mxu0 0.0
        %388 = vmatpush1.msra.mxu0 0.0
        %389 = vmatprep.subr.mxu0 0.0
        %390 = vmatpush1.msra.mxu0 0.0
        %391 = vmatprep.subr.mxu0 0.0
        %392 = vmatpush1.msra.mxu0 0.0
        %393 = vmatprep.subr.mxu0 0.0
        %394 = vmatpush1.msra.mxu0 0.0
        %395 = vmatprep.subr.mxu0 0.0
        %396 = vmatpush1.msra.mxu0 0.0
        %397 = vmatprep.subr.mxu0 0.0
        %398 = vmatpush1.msra.mxu0 0.0
        %399 = vmatprep.subr.mxu0 0.0
        %400 = vmatpush1.msra.mxu0 0.0
        %401 = vmatprep.subr.mxu0 0.0
        %402 = vmatpush1.msra.mxu0 0.0
        %403 = vmatprep.subr.mxu0 0.0
        %404 = vmatpush1.msra.mxu0 0.0
        %405 = vmatprep.subr.mxu0 0.0
        %406 = vmatpush1.msra.mxu0 0.0
        %407 = vmatprep.subr.mxu0 0.0
        %408 = vmatpush1.msra.mxu0 0.0
        %409 = vmatprep.subr.mxu0 0.0
        %410 = vmatpush1.msra.mxu0 0.0
        %411 = vmatprep.subr.mxu0 0.0
        %412 = vmatpush1.msra.mxu0 0.0
        %413 = vmatprep.subr.mxu0 0.0
        %414 = vmatpush1.msra.mxu0 0.0
        %415 = vmatprep.subr.mxu0 0.0
        %416 = vmatpush1.msra.mxu0 0.0
        %417 = vmatprep.subr.mxu0 0.0
        %418 = vmatpush1.msra.mxu0 0.0
        %419 = vmatprep.subr.mxu0 0.0
        %420 = vmatpush1.msra.mxu0 0.0
        %421 = vmatprep.subr.mxu0 0.0
        %422 = vmatpush1.msra.mxu0 0.0
        %423 = vmatprep.subr.mxu0 0.0
        %424 = vmatpush1.msra.mxu0 0.0
        %425 = vmatprep.subr.mxu0 0.0
        %426 = vmatpush1.msra.mxu0 0.0
        %427 = vmatprep.subr.mxu0 0.0
        %428 = vmatpush1.msra.mxu0 0.0
        %429 = vmatprep.subr.mxu0 0.0
        %430 = vmatpush1.msra.mxu0 0.0
        %431 = vmatprep.mubr.f32.mxu0 0.0
        %432 = vmatmul.mubr.f32.gmra.mrb[0].mxu0 %v320
        %v433 = vpop.f32.mrb[0].mxu0
        %v434 = vadd.f32 0.0, %v433
        %v435 = vpop.f32.mrb[0].mxu0
        %436 = vmatprep.mubr.f32.mxu0 0.0
        %437 = vmatmul.mubr.f32.gmra.mrb[0].mxu0 %v323
        %v438 = vpop.f32.mrb[0].mxu0
        %v439 = vadd.f32 0.0, %v438
        %v440 = vpop.f32.mrb[0].mxu0
        %441 = vmatprep.mubr.f32.mxu0 0.0
        %442 = vmatmul.mubr.f32.gmra.mrb[0].mxu0 %v326
        %v443 = vpop.f32.mrb[0].mxu0
        %v444 = vadd.f32 0.0, %v443
        %v445 = vpop.f32.mrb[0].mxu0
        %446 = vmatprep.mubr.f32.mxu0 0.0
        %447 = vmatmul.mubr.f32.gmra.mrb[0].mxu0 %v329
        %v448 = vpop.f32.mrb[0].mxu0
        %v449 = vadd.f32 0.0, %v448
        %v450 = vpop.f32.mrb[0].mxu0
        %451 = vmatprep.mubr.f32.mxu0 0.0
        %452 = vmatmul.mubr.f32.gmra.mrb[0].mxu0 %v332
        %v453 = vpop.f32.mrb[0].mxu0
        %v454 = vadd.f32 0.0, %v453
        %v455 = vpop.f32.mrb[0].mxu0
        %456 = vmatprep.mubr.f32.mxu0 0.0
        %457 = vmatmul.mubr.f32.gmra.mrb[0].mxu0 %v335
        %v458 = vpop.f32.mrb[0].mxu0
        %v459 = vadd.f32 0.0, %v458
        %v460 = vpop.f32.mrb[0].mxu0
        %461 = vmatprep.mubr.f32.mxu0 0.0
        %462 = vmatmul.mubr.f32.gmra.mrb[0].mxu0 %v338
        %v463 = vpop.f32.mrb[0].mxu0
        %v464 = vadd.f32 0.0, %v463
        %v465 = vpop.f32.mrb[0].mxu0
        %466 = vmatprep.mubr.f32.mxu0 0.0
        %467 = vmatmul.mubr.f32.gmra.mrb[0].mxu0 %v341
        %v468 = vpop.f32.mrb[0].mxu0
        %v469 = vadd.f32 0.0, %v468
        %v470 = vpop.f32.mrb[0].mxu0
        %471 = vmatprep.mubr.f32.mxu0 0.0
        %472 = vmatmul.mubr.f32.gmra.mrb[0].mxu0 %v344
        %v473 = vpop.f32.mrb[0].mxu0
        %v474 = vadd.f32 0.0, %v473
        %v475 = vpop.f32.mrb[0].mxu0
        %476 = vmatprep.mubr.f32.mxu0 0.0
        %477 = vmatmul.mubr.f32.gmra.mrb[0].mxu0 %v347
        %v478 = vpop.f32.mrb[0].mxu0
        %v479 = vadd.f32 0.0, %v478
        %v480 = vpop.f32.mrb[0].mxu0
        %481 = vmatprep.mubr.f32.mxu0 0.0
        %482 = vmatmul.mubr.f32.gmra.mrb[0].mxu0 %v350
        %v483 = vpop.f32.mrb[0].mxu0
        %v484 = vadd.f32 0.0, %v483
        %v485 = vpop.f32.mrb[0].mxu0
        %486 = vmatprep.mubr.f32.mxu0 0.0
        %487 = vmatmul.mubr.f32.gmra.mrb[0].mxu0 %v353
        %v488 = vpop.f32.mrb[0].mxu0
        %v489 = vadd.f32 0.0, %v488
        %v490 = vpop.f32.mrb[0].mxu0
        %491 = vmatprep.mubr.f32.mxu0 0.0
        %492 = vmatmul.mubr.f32.gmra.mrb[0].mxu0 %v356
        %v493 = vpop.f32.mrb[0].mxu0
        %v494 = vadd.f32 0.0, %v493
        %v495 = vpop.f32.mrb[0].mxu0
        %496 = vmatprep.mubr.f32.mxu0 0.0
        %497 = vmatmul.mubr.f32.gmra.mrb[0].mxu0 %v359
        %v498 = vpop.f32.mrb[0].mxu0
        %v499 = vadd.f32 0.0, %v498
        %v500 = vpop.f32.mrb[0].mxu0
        %501 = vmatprep.mubr.f32.mxu0 0.0
        %502 = vmatmul.mubr.f32.gmra.mrb[0].mxu0 %v362
        %v503 = vpop.f32.mrb[0].mxu0
        %v504 = vadd.f32 0.0, %v503
        %v505 = vpop.f32.mrb[0].mxu0
        %506 = vmatprep.mubr.f32.mxu0 0.0
        %507 = vmatmul.mubr.f32.gmra.mrb[0].mxu0 %v365
        %v508 = vpop.f32.mrb[0].mxu0
        %v509 = vadd.f32 0.0, %v508
        %v510 = vpop.f32.mrb[0].mxu0
        %511 = vdwg.mxu0
        %v512 = vadd.f32 %v297, %v434
        %v513 = vadd.f32 %v297, %v439
        %v514 = vadd.f32 %v297, %v444
        %v515 = vadd.f32 %v297, %v449
        %v516 = vadd.f32 %v297, %v454
        %v517 = vadd.f32 %v297, %v459
        %v518 = vadd.f32 %v297, %v464
        %v519 = vadd.f32 %v297, %v469
        %v520 = vadd.f32 %v297, %v474
        %v521 = vadd.f32 %v297, %v479
        %v522 = vadd.f32 %v297, %v484
        %v523 = vadd.f32 %v297, %v489
        %v524 = vadd.f32 %v297, %v494
        %v525 = vadd.f32 %v297, %v499
        %v526 = vadd.f32 %v297, %v504
        %v527 = vadd.f32 %v297, %v509
        %s528 = sadd.s32 %s291, 1
        %s529 = scalar_lea.vmem %s290, %s528
        %v530 = vld [vmem:[%s529] sm:$0xff]
        %v531 = vld [vmem:[%s529 + $0x8] sm:$0xff]
        %v532 = vld [vmem:[%s529 + $0x10] sm:$0xff]
        %v533 = vld [vmem:[%s529 + $0x18] sm:$0xff]
        %v534 = vld [vmem:[%s529 + $0x20] sm:$0xff]
        %v535 = vld [vmem:[%s529 + $0x28] sm:$0xff]
        %v536 = vld [vmem:[%s529 + $0x30] sm:$0xff]
        %v537 = vld [vmem:[%s529 + $0x38] sm:$0xff]
        %v538 = vld [vmem:[%s529 + $0x40] sm:$0xff]
        %v539 = vld [vmem:[%s529 + $0x48] sm:$0xff]
        %v540 = vld [vmem:[%s529 + $0x50] sm:$0xff]
        %v541 = vld [vmem:[%s529 + $0x58] sm:$0xff]
        %v542 = vld [vmem:[%s529 + $0x60] sm:$0xff]
        %v543 = vld [vmem:[%s529 + $0x68] sm:$0xff]
        %v544 = vld [vmem:[%s529 + $0x70] sm:$0xff]
        %v545 = vld [vmem:[%s529 + $0x78] sm:$0xff]
        %s546 = scalar_lea.vmem %s1, 16
        %v547 = vld [vmem:[%s546] sm:$0xff]
        %v548 = vld [vmem:[%s546 + $0x8] sm:$0xff]
        %v550 = vsel %vm318, %v530, 0
        %v553 = vsel %vm318, %v531, 0
        %v556 = vsel %vm318, %v532, 0
        %v559 = vsel %vm318, %v533, 0
        %v562 = vsel %vm318, %v534, 0
        %v565 = vsel %vm318, %v535, 0
        %v568 = vsel %vm318, %v536, 0
        %v571 = vsel %vm318, %v537, 0
        %v574 = vsel %vm318, %v538, 0
        %v577 = vsel %vm318, %v539, 0
        %v580 = vsel %vm318, %v540, 0
        %v583 = vsel %vm318, %v541, 0
        %v586 = vsel %vm318, %v542, 0
        %v589 = vsel %vm318, %v543, 0
        %v592 = vsel %vm318, %v544, 0
        %v595 = vsel %vm318, %v545, 0
        %597 = vmatprep.subr.mxu0 0.0
        %598 = vmatpush1.msra.mxu0 %v547
        %599 = vmatprep.subr.mxu0 0.0
        %600 = vmatpush1.msra.mxu0 %v548
        %601 = vmatprep.subr.mxu0 0.0
        %602 = vmatpush1.msra.mxu0 0.0
        %603 = vmatprep.subr.mxu0 0.0
        %604 = vmatpush1.msra.mxu0 0.0
        %605 = vmatprep.subr.mxu0 0.0
        %606 = vmatpush1.msra.mxu0 0.0
        %607 = vmatprep.subr.mxu0 0.0
        %608 = vmatpush1.msra.mxu0 0.0
        %609 = vmatprep.subr.mxu0 0.0
        %610 = vmatpush1.msra.mxu0 0.0
        %611 = vmatprep.subr.mxu0 0.0
        %612 = vmatpush1.msra.mxu0 0.0
        %613 = vmatprep.subr.mxu0 0.0
        %614 = vmatpush1.msra.mxu0 0.0
        %615 = vmatprep.subr.mxu0 0.0
        %616 = vmatpush1.msra.mxu0 0.0
        %617 = vmatprep.subr.mxu0 0.0
        %618 = vmatpush1.msra.mxu0 0.0
        %619 = vmatprep.subr.mxu0 0.0
        %620 = vmatpush1.msra.mxu0 0.0
        %621 = vmatprep.subr.mxu0 0.0
        %622 = vmatpush1.msra.mxu0 0.0
        %623 = vmatprep.subr.mxu0 0.0
        %624 = vmatpush1.msra.mxu0 0.0
        %625 = vmatprep.subr.mxu0 0.0
        %626 = vmatpush1.msra.mxu0 0.0
        %627 = vmatprep.subr.mxu0 0.0
        %628 = vmatpush1.msra.mxu0 0.0
        %629 = vmatprep.subr.mxu0 0.0
        %630 = vmatpush1.msra.mxu0 0.0
        %631 = vmatprep.subr.mxu0 0.0
        %632 = vmatpush1.msra.mxu0 0.0
        %633 = vmatprep.subr.mxu0 0.0
        %634 = vmatpush1.msra.mxu0 0.0
        %635 = vmatprep.subr.mxu0 0.0
        %636 = vmatpush1.msra.mxu0 0.0
        %637 = vmatprep.subr.mxu0 0.0
        %638 = vmatpush1.msra.mxu0 0.0
        %639 = vmatprep.subr.mxu0 0.0
        %640 = vmatpush1.msra.mxu0 0.0
        %641 = vmatprep.subr.mxu0 0.0
        %642 = vmatpush1.msra.mxu0 0.0
        %643 = vmatprep.subr.mxu0 0.0
        %644 = vmatpush1.msra.mxu0 0.0
        %645 = vmatprep.subr.mxu0 0.0
        %646 = vmatpush1.msra.mxu0 0.0
        %647 = vmatprep.subr.mxu0 0.0
        %648 = vmatpush1.msra.mxu0 0.0
        %649 = vmatprep.subr.mxu0 0.0
        %650 = vmatpush1.msra.mxu0 0.0
        %651 = vmatprep.subr.mxu0 0.0
        %652 = vmatpush1.msra.mxu0 0.0
        %653 = vmatprep.subr.mxu0 0.0
        %654 = vmatpush1.msra.mxu0 0.0
        %655 = vmatprep.subr.mxu0 0.0
        %656 = vmatpush1.msra.mxu0 0.0
        %657 = vmatprep.subr.mxu0 0.0
        %658 = vmatpush1.msra.mxu0 0.0
        %659 = vmatprep.subr.mxu0 0.0
        %660 = vmatpush1.msra.mxu0 0.0
        %661 = vmatprep.mubr.f32.mxu0 0.0
        %662 = vmatmul.mubr.f32.gmra.mrb[0].mxu0 %v550
        %v663 = vpop.f32.mrb[0].mxu0
        %v664 = vadd.f32 0.0, %v663
        %v665 = vpop.f32.mrb[0].mxu0
        %666 = vmatprep.mubr.f32.mxu0 0.0
        %667 = vmatmul.mubr.f32.gmra.mrb[0].mxu0 %v553
        %v668 = vpop.f32.mrb[0].mxu0
        %v669 = vadd.f32 0.0, %v668
        %v670 = vpop.f32.mrb[0].mxu0
        %671 = vmatprep.mubr.f32.mxu0 0.0
        %672 = vmatmul.mubr.f32.gmra.mrb[0].mxu0 %v556
        %v673 = vpop.f32.mrb[0].mxu0
        %v674 = vadd.f32 0.0, %v673
        %v675 = vpop.f32.mrb[0].mxu0
        %676 = vmatprep.mubr.f32.mxu0 0.0
        %677 = vmatmul.mubr.f32.gmra.mrb[0].mxu0 %v559
        %v678 = vpop.f32.mrb[0].mxu0
        %v679 = vadd.f32 0.0, %v678
        %v680 = vpop.f32.mrb[0].mxu0
        %681 = vmatprep.mubr.f32.mxu0 0.0
        %682 = vmatmul.mubr.f32.gmra.mrb[0].mxu0 %v562
        %v683 = vpop.f32.mrb[0].mxu0
        %v684 = vadd.f32 0.0, %v683
        %v685 = vpop.f32.mrb[0].mxu0
        %686 = vmatprep.mubr.f32.mxu0 0.0
        %687 = vmatmul.mubr.f32.gmra.mrb[0].mxu0 %v565
        %v688 = vpop.f32.mrb[0].mxu0
        %v689 = vadd.f32 0.0, %v688
        %v690 = vpop.f32.mrb[0].mxu0
        %691 = vmatprep.mubr.f32.mxu0 0.0
        %692 = vmatmul.mubr.f32.gmra.mrb[0].mxu0 %v568
        %v693 = vpop.f32.mrb[0].mxu0
        %v694 = vadd.f32 0.0, %v693
        %v695 = vpop.f32.mrb[0].mxu0
        %696 = vmatprep.mubr.f32.mxu0 0.0
        %697 = vmatmul.mubr.f32.gmra.mrb[0].mxu0 %v571
        %v698 = vpop.f32.mrb[0].mxu0
        %v699 = vadd.f32 0.0, %v698
        %v700 = vpop.f32.mrb[0].mxu0
        %701 = vmatprep.mubr.f32.mxu0 0.0
        %702 = vmatmul.mubr.f32.gmra.mrb[0].mxu0 %v574
        %v703 = vpop.f32.mrb[0].mxu0
        %v704 = vadd.f32 0.0, %v703
        %v705 = vpop.f32.mrb[0].mxu0
        %706 = vmatprep.mubr.f32.mxu0 0.0
        %707 = vmatmul.mubr.f32.gmra.mrb[0].mxu0 %v577
        %v708 = vpop.f32.mrb[0].mxu0
        %v709 = vadd.f32 0.0, %v708
        %v710 = vpop.f32.mrb[0].mxu0
        %711 = vmatprep.mubr.f32.mxu0 0.0
        %712 = vmatmul.mubr.f32.gmra.mrb[0].mxu0 %v580
        %v713 = vpop.f32.mrb[0].mxu0
        %v714 = vadd.f32 0.0, %v713
        %v715 = vpop.f32.mrb[0].mxu0
        %716 = vmatprep.mubr.f32.mxu0 0.0
        %717 = vmatmul.mubr.f32.gmra.mrb[0].mxu0 %v583
        %v718 = vpop.f32.mrb[0].mxu0
        %v719 = vadd.f32 0.0, %v718
        %v720 = vpop.f32.mrb[0].mxu0
        %721 = vmatprep.mubr.f32.mxu0 0.0
        %722 = vmatmul.mubr.f32.gmra.mrb[0].mxu0 %v586
        %v723 = vpop.f32.mrb[0].mxu0
        %v724 = vadd.f32 0.0, %v723
        %v725 = vpop.f32.mrb[0].mxu0
        %726 = vmatprep.mubr.f32.mxu0 0.0
        %727 = vmatmul.mubr.f32.gmra.mrb[0].mxu0 %v589
        %v728 = vpop.f32.mrb[0].mxu0
        %v729 = vadd.f32 0.0, %v728
        %v730 = vpop.f32.mrb[0].mxu0
        %731 = vmatprep.mubr.f32.mxu0 0.0
        %732 = vmatmul.mubr.f32.gmra.mrb[0].mxu0 %v592
        %v733 = vpop.f32.mrb[0].mxu0
        %v734 = vadd.f32 0.0, %v733
        %v735 = vpop.f32.mrb[0].mxu0
        %736 = vmatprep.mubr.f32.mxu0 0.0
        %737 = vmatmul.mubr.f32.gmra.mrb[0].mxu0 %v595
        %v738 = vpop.f32.mrb[0].mxu0
        %v739 = vadd.f32 0.0, %v738
        %v740 = vpop.f32.mrb[0].mxu0
        %741 = vdwg.mxu0
        %v742 = vadd.f32 %v512, %v664
        %v743 = vadd.f32 %v513, %v669
        %v744 = vadd.f32 %v514, %v674
        %v745 = vadd.f32 %v515, %v679
        %v746 = vadd.f32 %v516, %v684
        %v747 = vadd.f32 %v517, %v689
        %v748 = vadd.f32 %v518, %v694
        %v749 = vadd.f32 %v519, %v699
        %v750 = vadd.f32 %v520, %v704
        %v751 = vadd.f32 %v521, %v709
        %v752 = vadd.f32 %v522, %v714
        %v753 = vadd.f32 %v523, %v719
        %v754 = vadd.f32 %v524, %v724
        %v755 = vadd.f32 %v525, %v729
        %v756 = vadd.f32 %v526, %v734
        %v757 = vadd.f32 %v527, %v739
        %s758 = sadd.s32 %s291, 2
        %s759 = scalar_lea.vmem %s290, %s758
        %v760 = vld [vmem:[%s759] sm:$0xff]
        %v761 = vld [vmem:[%s759 + $0x8] sm:$0xff]
        %v762 = vld [vmem:[%s759 + $0x10] sm:$0xff]
        %v763 = vld [vmem:[%s759 + $0x18] sm:$0xff]
        %v764 = vld [vmem:[%s759 + $0x20] sm:$0xff]
        %v765 = vld [vmem:[%s759 + $0x28] sm:$0xff]
        %v766 = vld [vmem:[%s759 + $0x30] sm:$0xff]
        %v767 = vld [vmem:[%s759 + $0x38] sm:$0xff]
        %v768 = vld [vmem:[%s759 + $0x40] sm:$0xff]
        %v769 = vld [vmem:[%s759 + $0x48] sm:$0xff]
        %v770 = vld [vmem:[%s759 + $0x50] sm:$0xff]
        %v771 = vld [vmem:[%s759 + $0x58] sm:$0xff]
        %v772 = vld [vmem:[%s759 + $0x60] sm:$0xff]
        %v773 = vld [vmem:[%s759 + $0x68] sm:$0xff]
        %v774 = vld [vmem:[%s759 + $0x70] sm:$0xff]
        %v775 = vld [vmem:[%s759 + $0x78] sm:$0xff]
        %s776 = scalar_lea.vmem %s1, 32
        %v777 = vld [vmem:[%s776] sm:$0xff]
        %v778 = vld [vmem:[%s776 + $0x8] sm:$0xff]
        %v780 = vsel %vm318, %v760, 0
        %v783 = vsel %vm318, %v761, 0
        %v786 = vsel %vm318, %v762, 0
        %v789 = vsel %vm318, %v763, 0
        %v792 = vsel %vm318, %v764, 0
        %v795 = vsel %vm318, %v765, 0
        %v798 = vsel %vm318, %v766, 0
        %v801 = vsel %vm318, %v767, 0
        %v804 = vsel %vm318, %v768, 0
        %v807 = vsel %vm318, %v769, 0
        %v810 = vsel %vm318, %v770, 0
        %v813 = vsel %vm318, %v771, 0
        %v816 = vsel %vm318, %v772, 0
        %v819 = vsel %vm318, %v773, 0
        %v822 = vsel %vm318, %v774, 0
        %v825 = vsel %vm318, %v775, 0
        %827 = vmatprep.subr.mxu0 0.0
        %828 = vmatpush1.msra.mxu0 %v777
        %829 = vmatprep.subr.mxu0 0.0
        %830 = vmatpush1.msra.mxu0 %v778
        %831 = vmatprep.subr.mxu0 0.0
        %832 = vmatpush1.msra.mxu0 0.0
        %833 = vmatprep.subr.mxu0 0.0
        %834 = vmatpush1.msra.mxu0 0.0
        %835 = vmatprep.subr.mxu0 0.0
        %836 = vmatpush1.msra.mxu0 0.0
        %837 = vmatprep.subr.mxu0 0.0
        %838 = vmatpush1.msra.mxu0 0.0
        %839 = vmatprep.subr.mxu0 0.0
        %840 = vmatpush1.msra.mxu0 0.0
        %841 = vmatprep.subr.mxu0 0.0
        %842 = vmatpush1.msra.mxu0 0.0
        %843 = vmatprep.subr.mxu0 0.0
        %844 = vmatpush1.msra.mxu0 0.0
        %845 = vmatprep.subr.mxu0 0.0
        %846 = vmatpush1.msra.mxu0 0.0
        %847 = vmatprep.subr.mxu0 0.0
        %848 = vmatpush1.msra.mxu0 0.0
        %849 = vmatprep.subr.mxu0 0.0
        %850 = vmatpush1.msra.mxu0 0.0
        %851 = vmatprep.subr.mxu0 0.0
        %852 = vmatpush1.msra.mxu0 0.0
        %853 = vmatprep.subr.mxu0 0.0
        %854 = vmatpush1.msra.mxu0 0.0
        %855 = vmatprep.subr.mxu0 0.0
        %856 = vmatpush1.msra.mxu0 0.0
        %857 = vmatprep.subr.mxu0 0.0
        %858 = vmatpush1.msra.mxu0 0.0
        %859 = vmatprep.subr.mxu0 0.0
        %860 = vmatpush1.msra.mxu0 0.0
        %861 = vmatprep.subr.mxu0 0.0
        %862 = vmatpush1.msra.mxu0 0.0
        %863 = vmatprep.subr.mxu0 0.0
        %864 = vmatpush1.msra.mxu0 0.0
        %865 = vmatprep.subr.mxu0 0.0
        %866 = vmatpush1.msra.mxu0 0.0
        %867 = vmatprep.subr.mxu0 0.0
        %868 = vmatpush1.msra.mxu0 0.0
        %869 = vmatprep.subr.mxu0 0.0
        %870 = vmatpush1.msra.mxu0 0.0
        %871 = vmatprep.subr.mxu0 0.0
        %872 = vmatpush1.msra.mxu0 0.0
        %873 = vmatprep.subr.mxu0 0.0
        %874 = vmatpush1.msra.mxu0 0.0
        %875 = vmatprep.subr.mxu0 0.0
        %876 = vmatpush1.msra.mxu0 0.0
        %877 = vmatprep.subr.mxu0 0.0
        %878 = vmatpush1.msra.mxu0 0.0
        %879 = vmatprep.subr.mxu0 0.0
        %880 = vmatpush1.msra.mxu0 0.0
        %881 = vmatprep.subr.mxu0 0.0
        %882 = vmatpush1.msra.mxu0 0.0
        %883 = vmatprep.subr.mxu0 0.0
        %884 = vmatpush1.msra.mxu0 0.0
        %885 = vmatprep.subr.mxu0 0.0
        %886 = vmatpush1.msra.mxu0 0.0
        %887 = vmatprep.subr.mxu0 0.0
        %888 = vmatpush1.msra.mxu0 0.0
        %889 = vmatprep.subr.mxu0 0.0
        %890 = vmatpush1.msra.mxu0 0.0
        %891 = vmatprep.mubr.f32.mxu0 0.0
        %892 = vmatmul.mubr.f32.gmra.mrb[0].mxu0 %v780
        %v893 = vpop.f32.mrb[0].mxu0
        %v894 = vadd.f32 0.0, %v893
        %v895 = vpop.f32.mrb[0].mxu0
        %896 = vmatprep.mubr.f32.mxu0 0.0
        %897 = vmatmul.mubr.f32.gmra.mrb[0].mxu0 %v783
        %v898 = vpop.f32.mrb[0].mxu0
        %v899 = vadd.f32 0.0, %v898
        %v900 = vpop.f32.mrb[0].mxu0
        %901 = vmatprep.mubr.f32.mxu0 0.0
        %902 = vmatmul.mubr.f32.gmra.mrb[0].mxu0 %v786
        %v903 = vpop.f32.mrb[0].mxu0
        %v904 = vadd.f32 0.0, %v903
        %v905 = vpop.f32.mrb[0].mxu0
        %906 = vmatprep.mubr.f32.mxu0 0.0
        %907 = vmatmul.mubr.f32.gmra.mrb[0].mxu0 %v789
        %v908 = vpop.f32.mrb[0].mxu0
        %v909 = vadd.f32 0.0, %v908
        %v910 = vpop.f32.mrb[0].mxu0
        %911 = vmatprep.mubr.f32.mxu0 0.0
        %912 = vmatmul.mubr.f32.gmra.mrb[0].mxu0 %v792
        %v913 = vpop.f32.mrb[0].mxu0
        %v914 = vadd.f32 0.0, %v913
        %v915 = vpop.f32.mrb[0].mxu0
        %916 = vmatprep.mubr.f32.mxu0 0.0
        %917 = vmatmul.mubr.f32.gmra.mrb[0].mxu0 %v795
        %v918 = vpop.f32.mrb[0].mxu0
        %v919 = vadd.f32 0.0, %v918
        %v920 = vpop.f32.mrb[0].mxu0
        %921 = vmatprep.mubr.f32.mxu0 0.0
        %922 = vmatmul.mubr.f32.gmra.mrb[0].mxu0 %v798
        %v923 = vpop.f32.mrb[0].mxu0
        %v924 = vadd.f32 0.0, %v923
        %v925 = vpop.f32.mrb[0].mxu0
        %926 = vmatprep.mubr.f32.mxu0 0.0
        %927 = vmatmul.mubr.f32.gmra.mrb[0].mxu0 %v801
        %v928 = vpop.f32.mrb[0].mxu0
        %v929 = vadd.f32 0.0, %v928
        %v930 = vpop.f32.mrb[0].mxu0
        %931 = vmatprep.mubr.f32.mxu0 0.0
        %932 = vmatmul.mubr.f32.gmra.mrb[0].mxu0 %v804
        %v933 = vpop.f32.mrb[0].mxu0
        %v934 = vadd.f32 0.0, %v933
        %v935 = vpop.f32.mrb[0].mxu0
        %936 = vmatprep.mubr.f32.mxu0 0.0
        %937 = vmatmul.mubr.f32.gmra.mrb[0].mxu0 %v807
        %v938 = vpop.f32.mrb[0].mxu0
        %v939 = vadd.f32 0.0, %v938
        %v940 = vpop.f32.mrb[0].mxu0
        %941 = vmatprep.mubr.f32.mxu0 0.0
        %942 = vmatmul.mubr.f32.gmra.mrb[0].mxu0 %v810
        %v943 = vpop.f32.mrb[0].mxu0
        %v944 = vadd.f32 0.0, %v943
        %v945 = vpop.f32.mrb[0].mxu0
        %946 = vmatprep.mubr.f32.mxu0 0.0
        %947 = vmatmul.mubr.f32.gmra.mrb[0].mxu0 %v813
        %v948 = vpop.f32.mrb[0].mxu0
        %v949 = vadd.f32 0.0, %v948
        %v950 = vpop.f32.mrb[0].mxu0
        %951 = vmatprep.mubr.f32.mxu0 0.0
        %952 = vmatmul.mubr.f32.gmra.mrb[0].mxu0 %v816
        %v953 = vpop.f32.mrb[0].mxu0
        %v954 = vadd.f32 0.0, %v953
        %v955 = vpop.f32.mrb[0].mxu0
        %956 = vmatprep.mubr.f32.mxu0 0.0
        %957 = vmatmul.mubr.f32.gmra.mrb[0].mxu0 %v819
        %v958 = vpop.f32.mrb[0].mxu0
        %v959 = vadd.f32 0.0, %v958
        %v960 = vpop.f32.mrb[0].mxu0
        %961 = vmatprep.mubr.f32.mxu0 0.0
        %962 = vmatmul.mubr.f32.gmra.mrb[0].mxu0 %v822
        %v963 = vpop.f32.mrb[0].mxu0
        %v964 = vadd.f32 0.0, %v963
        %v965 = vpop.f32.mrb[0].mxu0
        %966 = vmatprep.mubr.f32.mxu0 0.0
        %967 = vmatmul.mubr.f32.gmra.mrb[0].mxu0 %v825
        %v968 = vpop.f32.mrb[0].mxu0
        %v969 = vadd.f32 0.0, %v968
        %v970 = vpop.f32.mrb[0].mxu0
        %971 = vdwg.mxu0
        %v972 = vadd.f32 %v742, %v894
        %v973 = vadd.f32 %v743, %v899
        %v974 = vadd.f32 %v744, %v904
        %v975 = vadd.f32 %v745, %v909
        %v976 = vadd.f32 %v746, %v914
        %v977 = vadd.f32 %v747, %v919
        %v978 = vadd.f32 %v748, %v924
        %v979 = vadd.f32 %v749, %v929
        %v980 = vadd.f32 %v750, %v934
        %v981 = vadd.f32 %v751, %v939
        %v982 = vadd.f32 %v752, %v944
        %v983 = vadd.f32 %v753, %v949
        %v984 = vadd.f32 %v754, %v954
        %v985 = vadd.f32 %v755, %v959
        %v986 = vadd.f32 %v756, %v964
        %v987 = vadd.f32 %v757, %v969
        %s988 = sadd.s32 %s291, 3
        %s989 = scalar_lea.vmem %s290, %s988
        %v990 = vld [vmem:[%s989] sm:$0xff]
        %v991 = vld [vmem:[%s989 + $0x8] sm:$0xff]
        %v992 = vld [vmem:[%s989 + $0x10] sm:$0xff]
        %v993 = vld [vmem:[%s989 + $0x18] sm:$0xff]
        %v994 = vld [vmem:[%s989 + $0x20] sm:$0xff]
        %v995 = vld [vmem:[%s989 + $0x28] sm:$0xff]
        %v996 = vld [vmem:[%s989 + $0x30] sm:$0xff]
        %v997 = vld [vmem:[%s989 + $0x38] sm:$0xff]
        %v998 = vld [vmem:[%s989 + $0x40] sm:$0xff]
        %v999 = vld [vmem:[%s989 + $0x48] sm:$0xff]
        %v1000 = vld [vmem:[%s989 + $0x50] sm:$0xff]
        %v1001 = vld [vmem:[%s989 + $0x58] sm:$0xff]
        %v1002 = vld [vmem:[%s989 + $0x60] sm:$0xff]
        %v1003 = vld [vmem:[%s989 + $0x68] sm:$0xff]
        %v1004 = vld [vmem:[%s989 + $0x70] sm:$0xff]
        %v1005 = vld [vmem:[%s989 + $0x78] sm:$0xff]
        %s1006 = scalar_lea.vmem %s1, 48
        %v1007 = vld [vmem:[%s1006] sm:$0xff]
        %v1008 = vld [vmem:[%s1006 + $0x8] sm:$0xff]
        %v1010 = vsel %vm318, %v990, 0
        %v1013 = vsel %vm318, %v991, 0
        %v1016 = vsel %vm318, %v992, 0
        %v1019 = vsel %vm318, %v993, 0
        %v1022 = vsel %vm318, %v994, 0
        %v1025 = vsel %vm318, %v995, 0
        %v1028 = vsel %vm318, %v996, 0
        %v1031 = vsel %vm318, %v997, 0
        %v1034 = vsel %vm318, %v998, 0
        %v1037 = vsel %vm318, %v999, 0
        %v1040 = vsel %vm318, %v1000, 0
        %v1043 = vsel %vm318, %v1001, 0
        %v1046 = vsel %vm318, %v1002, 0
        %v1049 = vsel %vm318, %v1003, 0
        %v1052 = vsel %vm318, %v1004, 0
        %v1055 = vsel %vm318, %v1005, 0
        %1057 = vmatprep.subr.mxu0 0.0
        %1058 = vmatpush1.msra.mxu0 %v1007
        %1059 = vmatprep.subr.mxu0 0.0
        %1060 = vmatpush1.msra.mxu0 %v1008
        %1061 = vmatprep.subr.mxu0 0.0
        %1062 = vmatpush1.msra.mxu0 0.0
        %1063 = vmatprep.subr.mxu0 0.0
        %1064 = vmatpush1.msra.mxu0 0.0
        %1065 = vmatprep.subr.mxu0 0.0
        %1066 = vmatpush1.msra.mxu0 0.0
        %1067 = vmatprep.subr.mxu0 0.0
        %1068 = vmatpush1.msra.mxu0 0.0
        %1069 = vmatprep.subr.mxu0 0.0
        %1070 = vmatpush1.msra.mxu0 0.0
        %1071 = vmatprep.subr.mxu0 0.0
        %1072 = vmatpush1.msra.mxu0 0.0
        %1073 = vmatprep.subr.mxu0 0.0
        %1074 = vmatpush1.msra.mxu0 0.0
        %1075 = vmatprep.subr.mxu0 0.0
        %1076 = vmatpush1.msra.mxu0 0.0
        %1077 = vmatprep.subr.mxu0 0.0
        %1078 = vmatpush1.msra.mxu0 0.0
        %1079 = vmatprep.subr.mxu0 0.0
        %1080 = vmatpush1.msra.mxu0 0.0
        %1081 = vmatprep.subr.mxu0 0.0
        %1082 = vmatpush1.msra.mxu0 0.0
        %1083 = vmatprep.subr.mxu0 0.0
        %1084 = vmatpush1.msra.mxu0 0.0
        %1085 = vmatprep.subr.mxu0 0.0
        %1086 = vmatpush1.msra.mxu0 0.0
        %1087 = vmatprep.subr.mxu0 0.0
        %1088 = vmatpush1.msra.mxu0 0.0
        %1089 = vmatprep.subr.mxu0 0.0
        %1090 = vmatpush1.msra.mxu0 0.0
        %1091 = vmatprep.subr.mxu0 0.0
        %1092 = vmatpush1.msra.mxu0 0.0
        %1093 = vmatprep.subr.mxu0 0.0
        %1094 = vmatpush1.msra.mxu0 0.0
        %1095 = vmatprep.subr.mxu0 0.0
        %1096 = vmatpush1.msra.mxu0 0.0
        %1097 = vmatprep.subr.mxu0 0.0
        %1098 = vmatpush1.msra.mxu0 0.0
        %1099 = vmatprep.subr.mxu0 0.0
        %1100 = vmatpush1.msra.mxu0 0.0
        %1101 = vmatprep.subr.mxu0 0.0
        %1102 = vmatpush1.msra.mxu0 0.0
        %1103 = vmatprep.subr.mxu0 0.0
        %1104 = vmatpush1.msra.mxu0 0.0
        %1105 = vmatprep.subr.mxu0 0.0
        %1106 = vmatpush1.msra.mxu0 0.0
        %1107 = vmatprep.subr.mxu0 0.0
        %1108 = vmatpush1.msra.mxu0 0.0
        %1109 = vmatprep.subr.mxu0 0.0
        %1110 = vmatpush1.msra.mxu0 0.0
        %1111 = vmatprep.subr.mxu0 0.0
        %1112 = vmatpush1.msra.mxu0 0.0
        %1113 = vmatprep.subr.mxu0 0.0
        %1114 = vmatpush1.msra.mxu0 0.0
        %1115 = vmatprep.subr.mxu0 0.0
        %1116 = vmatpush1.msra.mxu0 0.0
        %1117 = vmatprep.subr.mxu0 0.0
        %1118 = vmatpush1.msra.mxu0 0.0
        %1119 = vmatprep.subr.mxu0 0.0
        %1120 = vmatpush1.msra.mxu0 0.0
        %1121 = vmatprep.mubr.f32.mxu0 0.0
        %1122 = vmatmul.mubr.f32.gmra.mrb[0].mxu0 %v1010
        %v1123 = vpop.f32.mrb[0].mxu0
        %v1124 = vadd.f32 0.0, %v1123
        %v1125 = vpop.f32.mrb[0].mxu0
        %1126 = vmatprep.mubr.f32.mxu0 0.0
        %1127 = vmatmul.mubr.f32.gmra.mrb[0].mxu0 %v1013
        %v1128 = vpop.f32.mrb[0].mxu0
        %v1129 = vadd.f32 0.0, %v1128
        %v1130 = vpop.f32.mrb[0].mxu0
        %1131 = vmatprep.mubr.f32.mxu0 0.0
        %1132 = vmatmul.mubr.f32.gmra.mrb[0].mxu0 %v1016
        %v1133 = vpop.f32.mrb[0].mxu0
        %v1134 = vadd.f32 0.0, %v1133
        %v1135 = vpop.f32.mrb[0].mxu0
        %1136 = vmatprep.mubr.f32.mxu0 0.0
        %1137 = vmatmul.mubr.f32.gmra.mrb[0].mxu0 %v1019
        %v1138 = vpop.f32.mrb[0].mxu0
        %v1139 = vadd.f32 0.0, %v1138
        %v1140 = vpop.f32.mrb[0].mxu0
        %1141 = vmatprep.mubr.f32.mxu0 0.0
        %1142 = vmatmul.mubr.f32.gmra.mrb[0].mxu0 %v1022
        %v1143 = vpop.f32.mrb[0].mxu0
        %v1144 = vadd.f32 0.0, %v1143
        %v1145 = vpop.f32.mrb[0].mxu0
        %1146 = vmatprep.mubr.f32.mxu0 0.0
        %1147 = vmatmul.mubr.f32.gmra.mrb[0].mxu0 %v1025
        %v1148 = vpop.f32.mrb[0].mxu0
        %v1149 = vadd.f32 0.0, %v1148
        %v1150 = vpop.f32.mrb[0].mxu0
        %1151 = vmatprep.mubr.f32.mxu0 0.0
        %1152 = vmatmul.mubr.f32.gmra.mrb[0].mxu0 %v1028
        %v1153 = vpop.f32.mrb[0].mxu0
        %v1154 = vadd.f32 0.0, %v1153
        %v1155 = vpop.f32.mrb[0].mxu0
        %1156 = vmatprep.mubr.f32.mxu0 0.0
        %1157 = vmatmul.mubr.f32.gmra.mrb[0].mxu0 %v1031
        %v1158 = vpop.f32.mrb[0].mxu0
        %v1159 = vadd.f32 0.0, %v1158
        %v1160 = vpop.f32.mrb[0].mxu0
        %1161 = vmatprep.mubr.f32.mxu0 0.0
        %1162 = vmatmul.mubr.f32.gmra.mrb[0].mxu0 %v1034
        %v1163 = vpop.f32.mrb[0].mxu0
        %v1164 = vadd.f32 0.0, %v1163
        %v1165 = vpop.f32.mrb[0].mxu0
        %1166 = vmatprep.mubr.f32.mxu0 0.0
        %1167 = vmatmul.mubr.f32.gmra.mrb[0].mxu0 %v1037
        %v1168 = vpop.f32.mrb[0].mxu0
        %v1169 = vadd.f32 0.0, %v1168
        %v1170 = vpop.f32.mrb[0].mxu0
        %1171 = vmatprep.mubr.f32.mxu0 0.0
        %1172 = vmatmul.mubr.f32.gmra.mrb[0].mxu0 %v1040
        %v1173 = vpop.f32.mrb[0].mxu0
        %v1174 = vadd.f32 0.0, %v1173
        %v1175 = vpop.f32.mrb[0].mxu0
        %1176 = vmatprep.mubr.f32.mxu0 0.0
        %1177 = vmatmul.mubr.f32.gmra.mrb[0].mxu0 %v1043
        %v1178 = vpop.f32.mrb[0].mxu0
        %v1179 = vadd.f32 0.0, %v1178
        %v1180 = vpop.f32.mrb[0].mxu0
        %1181 = vmatprep.mubr.f32.mxu0 0.0
        %1182 = vmatmul.mubr.f32.gmra.mrb[0].mxu0 %v1046
        %v1183 = vpop.f32.mrb[0].mxu0
        %v1184 = vadd.f32 0.0, %v1183
        %v1185 = vpop.f32.mrb[0].mxu0
        %1186 = vmatprep.mubr.f32.mxu0 0.0
        %1187 = vmatmul.mubr.f32.gmra.mrb[0].mxu0 %v1049
        %v1188 = vpop.f32.mrb[0].mxu0
        %v1189 = vadd.f32 0.0, %v1188
        %v1190 = vpop.f32.mrb[0].mxu0
        %1191 = vmatprep.mubr.f32.mxu0 0.0
        %1192 = vmatmul.mubr.f32.gmra.mrb[0].mxu0 %v1052
        %v1193 = vpop.f32.mrb[0].mxu0
        %v1194 = vadd.f32 0.0, %v1193
        %v1195 = vpop.f32.mrb[0].mxu0
        %1196 = vmatprep.mubr.f32.mxu0 0.0
        %1197 = vmatmul.mubr.f32.gmra.mrb[0].mxu0 %v1055
        %v1198 = vpop.f32.mrb[0].mxu0
        %v1199 = vadd.f32 0.0, %v1198
        %v1200 = vpop.f32.mrb[0].mxu0
        %1201 = vdwg.mxu0
        %v1202 = vadd.f32 %v972, %v1124
        %v1203 = vadd.f32 %v973, %v1129
        %v1204 = vadd.f32 %v974, %v1134
        %v1205 = vadd.f32 %v975, %v1139
        %v1206 = vadd.f32 %v976, %v1144
        %v1207 = vadd.f32 %v977, %v1149
        %v1208 = vadd.f32 %v978, %v1154
        %v1209 = vadd.f32 %v979, %v1159
        %v1210 = vadd.f32 %v980, %v1164
        %v1211 = vadd.f32 %v981, %v1169
        %v1212 = vadd.f32 %v982, %v1174
        %v1213 = vadd.f32 %v983, %v1179
        %v1214 = vadd.f32 %v984, %v1184
        %v1215 = vadd.f32 %v985, %v1189
        %v1216 = vadd.f32 %v986, %v1194
        %v1217 = vadd.f32 %v987, %v1199
        %v1218 = vadd.f32 %v1202, 1.0
        %v1219 = vadd.f32 %v1203, 1.0
        %v1220 = vadd.f32 %v1204, 1.0
        %v1221 = vadd.f32 %v1205, 1.0
        %v1222 = vadd.f32 %v1206, 1.0
        %v1223 = vadd.f32 %v1207, 1.0
        %v1224 = vadd.f32 %v1208, 1.0
        %v1225 = vadd.f32 %v1209, 1.0
        %v1226 = vadd.f32 %v1210, 1.0
        %v1227 = vadd.f32 %v1211, 1.0
        %v1228 = vadd.f32 %v1212, 1.0
        %v1229 = vadd.f32 %v1213, 1.0
        %v1230 = vadd.f32 %v1214, 1.0
        %v1231 = vadd.f32 %v1215, 1.0
        %v1232 = vadd.f32 %v1216, 1.0
        %v1233 = vadd.f32 %v1217, 1.0
        %v1234 = vmul.f32 %v1218, 0.1
        %v1235 = vmul.f32 %v1219, 0.1
        %v1236 = vmul.f32 %v1220, 0.1
        %v1237 = vmul.f32 %v1221, 0.1
        %v1238 = vmul.f32 %v1222, 0.1
        %v1239 = vmul.f32 %v1223, 0.1
        %v1240 = vmul.f32 %v1224, 0.1
        %v1241 = vmul.f32 %v1225, 0.1
        %v1242 = vmul.f32 %v1226, 0.1
        %v1243 = vmul.f32 %v1227, 0.1
        %v1244 = vmul.f32 %v1228, 0.1
        %v1245 = vmul.f32 %v1229, 0.1
        %v1246 = vmul.f32 %v1230, 0.1
        %v1247 = vmul.f32 %v1231, 0.1
        %v1248 = vmul.f32 %v1232, 0.1
        %v1249 = vmul.f32 %v1233, 0.1
        %v1250 = vsub.f32 %v1234, 1.0
        %v1251 = vsub.f32 %v1235, 1.0
        %v1252 = vsub.f32 %v1236, 1.0
        %v1253 = vsub.f32 %v1237, 1.0
        %v1254 = vsub.f32 %v1238, 1.0
        %v1255 = vsub.f32 %v1239, 1.0
        %v1256 = vsub.f32 %v1240, 1.0
        %v1257 = vsub.f32 %v1241, 1.0
        %v1258 = vsub.f32 %v1242, 1.0
        %v1259 = vsub.f32 %v1243, 1.0
        %v1260 = vsub.f32 %v1244, 1.0
        %v1261 = vsub.f32 %v1245, 1.0
        %v1262 = vsub.f32 %v1246, 1.0
        %v1263 = vsub.f32 %v1247, 1.0
        %v1264 = vsub.f32 %v1248, 1.0
        %v1265 = vsub.f32 %v1249, 1.0
        %v1266 = vsub.f32 %v1202, 1.0
        %v1267 = vsub.f32 %v1203, 1.0
        %v1268 = vsub.f32 %v1204, 1.0
        %v1269 = vsub.f32 %v1205, 1.0
        %v1270 = vsub.f32 %v1206, 1.0
        %v1271 = vsub.f32 %v1207, 1.0
        %v1272 = vsub.f32 %v1208, 1.0
        %v1273 = vsub.f32 %v1209, 1.0
        %v1274 = vsub.f32 %v1210, 1.0
        %v1275 = vsub.f32 %v1211, 1.0
        %v1276 = vsub.f32 %v1212, 1.0
        %v1277 = vsub.f32 %v1213, 1.0
        %v1278 = vsub.f32 %v1214, 1.0
        %v1279 = vsub.f32 %v1215, 1.0
        %v1280 = vsub.f32 %v1216, 1.0
        %v1281 = vsub.f32 %v1217, 1.0
        %v1282 = vmul.f32 %v1266, 0.1
        %v1283 = vmul.f32 %v1267, 0.1
        %v1284 = vmul.f32 %v1268, 0.1
        %v1285 = vmul.f32 %v1269, 0.1
        %v1286 = vmul.f32 %v1270, 0.1
        %v1287 = vmul.f32 %v1271, 0.1
        %v1288 = vmul.f32 %v1272, 0.1
        %v1289 = vmul.f32 %v1273, 0.1
        %v1290 = vmul.f32 %v1274, 0.1
        %v1291 = vmul.f32 %v1275, 0.1
        %v1292 = vmul.f32 %v1276, 0.1
        %v1293 = vmul.f32 %v1277, 0.1
        %v1294 = vmul.f32 %v1278, 0.1
        %v1295 = vmul.f32 %v1279, 0.1
        %v1296 = vmul.f32 %v1280, 0.1
        %v1297 = vmul.f32 %v1281, 0.1
        %v1298 = vadd.f32 %v1282, 1.0
        %v1299 = vadd.f32 %v1283, 1.0
        %v1300 = vadd.f32 %v1284, 1.0
        %v1301 = vadd.f32 %v1285, 1.0
        %v1302 = vadd.f32 %v1286, 1.0
        %v1303 = vadd.f32 %v1287, 1.0
        %v1304 = vadd.f32 %v1288, 1.0
        %v1305 = vadd.f32 %v1289, 1.0
        %v1306 = vadd.f32 %v1290, 1.0
        %v1307 = vadd.f32 %v1291, 1.0
        %v1308 = vadd.f32 %v1292, 1.0
        %v1309 = vadd.f32 %v1293, 1.0
        %v1310 = vadd.f32 %v1294, 1.0
        %v1311 = vadd.f32 %v1295, 1.0
        %v1312 = vadd.f32 %v1296, 1.0
        %v1313 = vadd.f32 %v1297, 1.0
        %v1314 = vmin.f32 %v1298, %v1202
        %v1315 = vmin.f32 %v1299, %v1203
        %v1316 = vmin.f32 %v1300, %v1204
        %v1317 = vmin.f32 %v1301, %v1205
        %v1318 = vmin.f32 %v1302, %v1206
        %v1319 = vmin.f32 %v1303, %v1207
        %v1320 = vmin.f32 %v1304, %v1208
        %v1321 = vmin.f32 %v1305, %v1209
        %v1322 = vmin.f32 %v1306, %v1210
        %v1323 = vmin.f32 %v1307, %v1211
        %v1324 = vmin.f32 %v1308, %v1212
        %v1325 = vmin.f32 %v1309, %v1213
        %v1326 = vmin.f32 %v1310, %v1214
        %v1327 = vmin.f32 %v1311, %v1215
        %v1328 = vmin.f32 %v1312, %v1216
        %v1329 = vmin.f32 %v1313, %v1217
        %v1330 = vmax.f32 %v1250, %v1314
        %v1331 = vmax.f32 %v1251, %v1315
        %v1332 = vmax.f32 %v1252, %v1316
        %v1333 = vmax.f32 %v1253, %v1317
        %v1334 = vmax.f32 %v1254, %v1318
        %v1335 = vmax.f32 %v1255, %v1319
        %v1336 = vmax.f32 %v1256, %v1320
        %v1337 = vmax.f32 %v1257, %v1321
        %v1338 = vmax.f32 %v1258, %v1322
        %v1339 = vmax.f32 %v1259, %v1323
        %v1340 = vmax.f32 %v1260, %v1324
        %v1341 = vmax.f32 %v1261, %v1325
        %v1342 = vmax.f32 %v1262, %v1326
        %v1343 = vmax.f32 %v1263, %v1327
        %v1344 = vmax.f32 %v1264, %v1328
        %v1345 = vmax.f32 %v1265, %v1329
        %v1346 = vld [vmem:[%s2] sm:$0xff]
        %v1347 = vld [vmem:[%s2 + $0x8] sm:$0xff]
        %v1348 = vld [vmem:[%s2 + $0x10] sm:$0xff]
        %v1349 = vld [vmem:[%s2 + $0x18] sm:$0xff]
        %v1350 = vld [vmem:[%s2 + $0x20] sm:$0xff]
        %v1351 = vld [vmem:[%s2 + $0x28] sm:$0xff]
        %v1352 = vld [vmem:[%s2 + $0x30] sm:$0xff]
        %v1353 = vld [vmem:[%s2 + $0x38] sm:$0xff]
        %v1354 = vld [vmem:[%s2 + $0x40] sm:$0xff]
        %v1355 = vld [vmem:[%s2 + $0x48] sm:$0xff]
        %v1356 = vld [vmem:[%s2 + $0x50] sm:$0xff]
        %v1357 = vld [vmem:[%s2 + $0x58] sm:$0xff]
        %v1358 = vld [vmem:[%s2 + $0x60] sm:$0xff]
        %v1359 = vld [vmem:[%s2 + $0x68] sm:$0xff]
        %v1360 = vld [vmem:[%s2 + $0x70] sm:$0xff]
        %v1361 = vld [vmem:[%s2 + $0x78] sm:$0xff]
        %v1362 = vld [vmem:[%s5] sm:$0x1]
        %v1364 = vlaneseq
        %v1365 = vshrl.u32 %v1364, 7
        %v1366 = vsub.s32 0, %v1365
        %v1367 = vrot.slane %v1362, %v1366
        %1369 = vmatprep.subr.mxu0 0.0
        %1370 = vmatpush1.msra.mxu0 %v1346
        %1371 = vmatprep.subr.mxu0 0.0
        %1372 = vmatpush1.msra.mxu0 %v1347
        %1373 = vmatprep.subr.mxu0 0.0
        %1374 = vmatpush1.msra.mxu0 %v1348
        %1375 = vmatprep.subr.mxu0 0.0
        %1376 = vmatpush1.msra.mxu0 %v1349
        %1377 = vmatprep.subr.mxu0 0.0
        %1378 = vmatpush1.msra.mxu0 %v1350
        %1379 = vmatprep.subr.mxu0 0.0
        %1380 = vmatpush1.msra.mxu0 %v1351
        %1381 = vmatprep.subr.mxu0 0.0
        %1382 = vmatpush1.msra.mxu0 %v1352
        %1383 = vmatprep.subr.mxu0 0.0
        %1384 = vmatpush1.msra.mxu0 %v1353
        %1385 = vmatprep.subr.mxu0 0.0
        %1386 = vmatpush1.msra.mxu0 %v1354
        %1387 = vmatprep.subr.mxu0 0.0
        %1388 = vmatpush1.msra.mxu0 %v1355
        %1389 = vmatprep.subr.mxu0 0.0
        %1390 = vmatpush1.msra.mxu0 %v1356
        %1391 = vmatprep.subr.mxu0 0.0
        %1392 = vmatpush1.msra.mxu0 %v1357
        %1393 = vmatprep.subr.mxu0 0.0
        %1394 = vmatpush1.msra.mxu0 %v1358
        %1395 = vmatprep.subr.mxu0 0.0
        %1396 = vmatpush1.msra.mxu0 %v1359
        %1397 = vmatprep.subr.mxu0 0.0
        %1398 = vmatpush1.msra.mxu0 %v1360
        %1399 = vmatprep.subr.mxu0 0.0
        %1400 = vmatpush1.msra.mxu0 %v1361
        %1401 = vmatprep.subr.mxu0 0.0
        %1402 = vmatpush1.msra.mxu0 0.0
        %1403 = vmatprep.subr.mxu0 0.0
        %1404 = vmatpush1.msra.mxu0 0.0
        %1405 = vmatprep.subr.mxu0 0.0
        %1406 = vmatpush1.msra.mxu0 0.0
        %1407 = vmatprep.subr.mxu0 0.0
        %1408 = vmatpush1.msra.mxu0 0.0
        %1409 = vmatprep.subr.mxu0 0.0
        %1410 = vmatpush1.msra.mxu0 0.0
        %1411 = vmatprep.subr.mxu0 0.0
        %1412 = vmatpush1.msra.mxu0 0.0
        %1413 = vmatprep.subr.mxu0 0.0
        %1414 = vmatpush1.msra.mxu0 0.0
        %1415 = vmatprep.subr.mxu0 0.0
        %1416 = vmatpush1.msra.mxu0 0.0
        %1417 = vmatprep.subr.mxu0 0.0
        %1418 = vmatpush1.msra.mxu0 0.0
        %1419 = vmatprep.subr.mxu0 0.0
        %1420 = vmatpush1.msra.mxu0 0.0
        %1421 = vmatprep.subr.mxu0 0.0
        %1422 = vmatpush1.msra.mxu0 0.0
        %1423 = vmatprep.subr.mxu0 0.0
        %1424 = vmatpush1.msra.mxu0 0.0
        %1425 = vmatprep.subr.mxu0 0.0
        %1426 = vmatpush1.msra.mxu0 0.0
        %1427 = vmatprep.subr.mxu0 0.0
        %1428 = vmatpush1.msra.mxu0 0.0
        %1429 = vmatprep.subr.mxu0 0.0
        %1430 = vmatpush1.msra.mxu0 0.0
        %1431 = vmatprep.subr.mxu0 0.0
        %1432 = vmatpush1.msra.mxu0 0.0
        %1433 = vmatprep.mubr.f32.mxu0 0.0
        %1434 = vmatmul.mubr.f32.gmra.mrb[0].mxu0 %v1330
        %v1435 = vpop.f32.mrb[0].mxu0
        %v1436 = vadd.f32 %v1367, %v1435
        %v1437 = vpop.f32.mrb[0].mxu0
        %1438 = vmatprep.mubr.f32.mxu0 0.0
        %1439 = vmatmul.mubr.f32.gmra.mrb[0].mxu0 %v1331
        %v1440 = vpop.f32.mrb[0].mxu0
        %v1441 = vadd.f32 %v1367, %v1440
        %v1442 = vpop.f32.mrb[0].mxu0
        %1443 = vmatprep.mubr.f32.mxu0 0.0
        %1444 = vmatmul.mubr.f32.gmra.mrb[0].mxu0 %v1332
        %v1445 = vpop.f32.mrb[0].mxu0
        %v1446 = vadd.f32 %v1367, %v1445
        %v1447 = vpop.f32.mrb[0].mxu0
        %1448 = vmatprep.mubr.f32.mxu0 0.0
        %1449 = vmatmul.mubr.f32.gmra.mrb[0].mxu0 %v1333
        %v1450 = vpop.f32.mrb[0].mxu0
        %v1451 = vadd.f32 %v1367, %v1450
        %v1452 = vpop.f32.mrb[0].mxu0
        %1453 = vmatprep.mubr.f32.mxu0 0.0
        %1454 = vmatmul.mubr.f32.gmra.mrb[0].mxu0 %v1334
        %v1455 = vpop.f32.mrb[0].mxu0
        %v1456 = vadd.f32 %v1367, %v1455
        %v1457 = vpop.f32.mrb[0].mxu0
        %1458 = vmatprep.mubr.f32.mxu0 0.0
        %1459 = vmatmul.mubr.f32.gmra.mrb[0].mxu0 %v1335
        %v1460 = vpop.f32.mrb[0].mxu0
        %v1461 = vadd.f32 %v1367, %v1460
        %v1462 = vpop.f32.mrb[0].mxu0
        %1463 = vmatprep.mubr.f32.mxu0 0.0
        %1464 = vmatmul.mubr.f32.gmra.mrb[0].mxu0 %v1336
        %v1465 = vpop.f32.mrb[0].mxu0
        %v1466 = vadd.f32 %v1367, %v1465
        %v1467 = vpop.f32.mrb[0].mxu0
        %1468 = vmatprep.mubr.f32.mxu0 0.0
        %1469 = vmatmul.mubr.f32.gmra.mrb[0].mxu0 %v1337
        %v1470 = vpop.f32.mrb[0].mxu0
        %v1471 = vadd.f32 %v1367, %v1470
        %v1472 = vpop.f32.mrb[0].mxu0
        %1473 = vmatprep.mubr.f32.mxu0 0.0
        %1474 = vmatmul.mubr.f32.gmra.mrb[0].mxu0 %v1338
        %v1475 = vpop.f32.mrb[0].mxu0
        %v1476 = vadd.f32 %v1367, %v1475
        %v1477 = vpop.f32.mrb[0].mxu0
        %1478 = vmatprep.mubr.f32.mxu0 0.0
        %1479 = vmatmul.mubr.f32.gmra.mrb[0].mxu0 %v1339
        %v1480 = vpop.f32.mrb[0].mxu0
        %v1481 = vadd.f32 %v1367, %v1480
        %v1482 = vpop.f32.mrb[0].mxu0
        %1483 = vmatprep.mubr.f32.mxu0 0.0
        %1484 = vmatmul.mubr.f32.gmra.mrb[0].mxu0 %v1340
        %v1485 = vpop.f32.mrb[0].mxu0
        %v1486 = vadd.f32 %v1367, %v1485
        %v1487 = vpop.f32.mrb[0].mxu0
        %1488 = vmatprep.mubr.f32.mxu0 0.0
        %1489 = vmatmul.mubr.f32.gmra.mrb[0].mxu0 %v1341
        %v1490 = vpop.f32.mrb[0].mxu0
        %v1491 = vadd.f32 %v1367, %v1490
        %v1492 = vpop.f32.mrb[0].mxu0
        %1493 = vmatprep.mubr.f32.mxu0 0.0
        %1494 = vmatmul.mubr.f32.gmra.mrb[0].mxu0 %v1342
        %v1495 = vpop.f32.mrb[0].mxu0
        %v1496 = vadd.f32 %v1367, %v1495
        %v1497 = vpop.f32.mrb[0].mxu0
        %1498 = vmatprep.mubr.f32.mxu0 0.0
        %1499 = vmatmul.mubr.f32.gmra.mrb[0].mxu0 %v1343
        %v1500 = vpop.f32.mrb[0].mxu0
        %v1501 = vadd.f32 %v1367, %v1500
        %v1502 = vpop.f32.mrb[0].mxu0
        %1503 = vmatprep.mubr.f32.mxu0 0.0
        %1504 = vmatmul.mubr.f32.gmra.mrb[0].mxu0 %v1344
        %v1505 = vpop.f32.mrb[0].mxu0
        %v1506 = vadd.f32 %v1367, %v1505
        %v1507 = vpop.f32.mrb[0].mxu0
        %1508 = vmatprep.mubr.f32.mxu0 0.0
        %1509 = vmatmul.mubr.f32.gmra.mrb[0].mxu0 %v1345
        %v1510 = vpop.f32.mrb[0].mxu0
        %v1511 = vadd.f32 %v1367, %v1510
        %v1512 = vpop.f32.mrb[0].mxu0
        %1513 = vdwg.mxu0
        %v1514 = vadd.f32 %v1436, 1.0
        %v1515 = vadd.f32 %v1441, 1.0
        %v1516 = vadd.f32 %v1446, 1.0
        %v1517 = vadd.f32 %v1451, 1.0
        %v1518 = vadd.f32 %v1456, 1.0
        %v1519 = vadd.f32 %v1461, 1.0
        %v1520 = vadd.f32 %v1466, 1.0
        %v1521 = vadd.f32 %v1471, 1.0
        %v1522 = vadd.f32 %v1476, 1.0
        %v1523 = vadd.f32 %v1481, 1.0
        %v1524 = vadd.f32 %v1486, 1.0
        %v1525 = vadd.f32 %v1491, 1.0
        %v1526 = vadd.f32 %v1496, 1.0
        %v1527 = vadd.f32 %v1501, 1.0
        %v1528 = vadd.f32 %v1506, 1.0
        %v1529 = vadd.f32 %v1511, 1.0
        %v1530 = vmul.f32 %v1514, 0.1
        %v1531 = vmul.f32 %v1515, 0.1
        %v1532 = vmul.f32 %v1516, 0.1
        %v1533 = vmul.f32 %v1517, 0.1
        %v1534 = vmul.f32 %v1518, 0.1
        %v1535 = vmul.f32 %v1519, 0.1
        %v1536 = vmul.f32 %v1520, 0.1
        %v1537 = vmul.f32 %v1521, 0.1
        %v1538 = vmul.f32 %v1522, 0.1
        %v1539 = vmul.f32 %v1523, 0.1
        %v1540 = vmul.f32 %v1524, 0.1
        %v1541 = vmul.f32 %v1525, 0.1
        %v1542 = vmul.f32 %v1526, 0.1
        %v1543 = vmul.f32 %v1527, 0.1
        %v1544 = vmul.f32 %v1528, 0.1
        %v1545 = vmul.f32 %v1529, 0.1
        %v1546 = vsub.f32 %v1530, 1.0
        %v1547 = vsub.f32 %v1531, 1.0
        %v1548 = vsub.f32 %v1532, 1.0
        %v1549 = vsub.f32 %v1533, 1.0
        %v1550 = vsub.f32 %v1534, 1.0
        %v1551 = vsub.f32 %v1535, 1.0
        %v1552 = vsub.f32 %v1536, 1.0
        %v1553 = vsub.f32 %v1537, 1.0
        %v1554 = vsub.f32 %v1538, 1.0
        %v1555 = vsub.f32 %v1539, 1.0
        %v1556 = vsub.f32 %v1540, 1.0
        %v1557 = vsub.f32 %v1541, 1.0
        %v1558 = vsub.f32 %v1542, 1.0
        %v1559 = vsub.f32 %v1543, 1.0
        %v1560 = vsub.f32 %v1544, 1.0
        %v1561 = vsub.f32 %v1545, 1.0
        %v1562 = vsub.f32 %v1436, 1.0
        %v1563 = vsub.f32 %v1441, 1.0
        %v1564 = vsub.f32 %v1446, 1.0
        %v1565 = vsub.f32 %v1451, 1.0
        %v1566 = vsub.f32 %v1456, 1.0
        %v1567 = vsub.f32 %v1461, 1.0
        %v1568 = vsub.f32 %v1466, 1.0
        %v1569 = vsub.f32 %v1471, 1.0
        %v1570 = vsub.f32 %v1476, 1.0
        %v1571 = vsub.f32 %v1481, 1.0
        %v1572 = vsub.f32 %v1486, 1.0
        %v1573 = vsub.f32 %v1491, 1.0
        %v1574 = vsub.f32 %v1496, 1.0
        %v1575 = vsub.f32 %v1501, 1.0
        %v1576 = vsub.f32 %v1506, 1.0
        %v1577 = vsub.f32 %v1511, 1.0
        %v1578 = vmul.f32 %v1562, 0.1
        %v1579 = vmul.f32 %v1563, 0.1
        %v1580 = vmul.f32 %v1564, 0.1
        %v1581 = vmul.f32 %v1565, 0.1
        %v1582 = vmul.f32 %v1566, 0.1
        %v1583 = vmul.f32 %v1567, 0.1
        %v1584 = vmul.f32 %v1568, 0.1
        %v1585 = vmul.f32 %v1569, 0.1
        %v1586 = vmul.f32 %v1570, 0.1
        %v1587 = vmul.f32 %v1571, 0.1
        %v1588 = vmul.f32 %v1572, 0.1
        %v1589 = vmul.f32 %v1573, 0.1
        %v1590 = vmul.f32 %v1574, 0.1
        %v1591 = vmul.f32 %v1575, 0.1
        %v1592 = vmul.f32 %v1576, 0.1
        %v1593 = vmul.f32 %v1577, 0.1
        %v1594 = vadd.f32 %v1578, 1.0
        %v1595 = vadd.f32 %v1579, 1.0
        %v1596 = vadd.f32 %v1580, 1.0
        %v1597 = vadd.f32 %v1581, 1.0
        %v1598 = vadd.f32 %v1582, 1.0
        %v1599 = vadd.f32 %v1583, 1.0
        %v1600 = vadd.f32 %v1584, 1.0
        %v1601 = vadd.f32 %v1585, 1.0
        %v1602 = vadd.f32 %v1586, 1.0
        %v1603 = vadd.f32 %v1587, 1.0
        %v1604 = vadd.f32 %v1588, 1.0
        %v1605 = vadd.f32 %v1589, 1.0
        %v1606 = vadd.f32 %v1590, 1.0
        %v1607 = vadd.f32 %v1591, 1.0
        %v1608 = vadd.f32 %v1592, 1.0
        %v1609 = vadd.f32 %v1593, 1.0
        %v1610 = vmin.f32 %v1594, %v1436
        %v1611 = vmin.f32 %v1595, %v1441
        %v1612 = vmin.f32 %v1596, %v1446
        %v1613 = vmin.f32 %v1597, %v1451
        %v1614 = vmin.f32 %v1598, %v1456
        %v1615 = vmin.f32 %v1599, %v1461
        %v1616 = vmin.f32 %v1600, %v1466
        %v1617 = vmin.f32 %v1601, %v1471
        %v1618 = vmin.f32 %v1602, %v1476
        %v1619 = vmin.f32 %v1603, %v1481
        %v1620 = vmin.f32 %v1604, %v1486
        %v1621 = vmin.f32 %v1605, %v1491
        %v1622 = vmin.f32 %v1606, %v1496
        %v1623 = vmin.f32 %v1607, %v1501
        %v1624 = vmin.f32 %v1608, %v1506
        %v1625 = vmin.f32 %v1609, %v1511
        %v1626 = vmax.f32 %v1546, %v1610
        %v1627 = vmax.f32 %v1547, %v1611
        %v1628 = vmax.f32 %v1548, %v1612
        %v1629 = vmax.f32 %v1549, %v1613
        %v1630 = vmax.f32 %v1550, %v1614
        %v1631 = vmax.f32 %v1551, %v1615
        %v1632 = vmax.f32 %v1552, %v1616
        %v1633 = vmax.f32 %v1553, %v1617
        %v1634 = vmax.f32 %v1554, %v1618
        %v1635 = vmax.f32 %v1555, %v1619
        %v1636 = vmax.f32 %v1556, %v1620
        %v1637 = vmax.f32 %v1557, %v1621
        %v1638 = vmax.f32 %v1558, %v1622
        %v1639 = vmax.f32 %v1559, %v1623
        %v1640 = vmax.f32 %v1560, %v1624
        %v1641 = vmax.f32 %v1561, %v1625
        %v1642 = vld [vmem:[%s3] sm:$0xff]
        %v1643 = vld [vmem:[%s6] sm:$0xff]
        %1645 = vset.pattern.permute.xlu0 0
        %1646 = vperm.xlu0 %1645, %v1643
        %v1647 = vpop.permute.xlu0 %1646
        %1649 = vmatprep.subr.mxu0 0.0
        %1650 = vmatpush1.xpose.msra.mxu0 %v1626
        %1651 = vmatprep.subr.mxu0 0.0
        %1652 = vmatpush1.xpose.msra.mxu0 %v1627
        %1653 = vmatprep.subr.mxu0 0.0
        %1654 = vmatpush1.xpose.msra.mxu0 %v1628
        %1655 = vmatprep.subr.mxu0 0.0
        %1656 = vmatpush1.xpose.msra.mxu0 %v1629
        %1657 = vmatprep.subr.mxu0 0.0
        %1658 = vmatpush1.xpose.msra.mxu0 %v1630
        %1659 = vmatprep.subr.mxu0 0.0
        %1660 = vmatpush1.xpose.msra.mxu0 %v1631
        %1661 = vmatprep.subr.mxu0 0.0
        %1662 = vmatpush1.xpose.msra.mxu0 %v1632
        %1663 = vmatprep.subr.mxu0 0.0
        %1664 = vmatpush1.xpose.msra.mxu0 %v1633
        %1665 = vmatprep.subr.mxu0 0.0
        %1666 = vmatpush1.xpose.msra.mxu0 %v1634
        %1667 = vmatprep.subr.mxu0 0.0
        %1668 = vmatpush1.xpose.msra.mxu0 %v1635
        %1669 = vmatprep.subr.mxu0 0.0
        %1670 = vmatpush1.xpose.msra.mxu0 %v1636
        %1671 = vmatprep.subr.mxu0 0.0
        %1672 = vmatpush1.xpose.msra.mxu0 %v1637
        %1673 = vmatprep.subr.mxu0 0.0
        %1674 = vmatpush1.xpose.msra.mxu0 %v1638
        %1675 = vmatprep.subr.mxu0 0.0
        %1676 = vmatpush1.xpose.msra.mxu0 %v1639
        %1677 = vmatprep.subr.mxu0 0.0
        %1678 = vmatpush1.xpose.msra.mxu0 %v1640
        %1679 = vmatprep.subr.mxu0 0.0
        %1680 = vmatpush1.xpose.msra.mxu0 %v1641
        %1681 = vmatprep.subr.mxu0 0.0
        %1682 = vmatpush1.xpose.msra.mxu0 0.0
        %1683 = vmatprep.subr.mxu0 0.0
        %1684 = vmatpush1.xpose.msra.mxu0 0.0
        %1685 = vmatprep.subr.mxu0 0.0
        %1686 = vmatpush1.xpose.msra.mxu0 0.0
        %1687 = vmatprep.subr.mxu0 0.0
        %1688 = vmatpush1.xpose.msra.mxu0 0.0
        %1689 = vmatprep.subr.mxu0 0.0
        %1690 = vmatpush1.xpose.msra.mxu0 0.0
        %1691 = vmatprep.subr.mxu0 0.0
        %1692 = vmatpush1.xpose.msra.mxu0 0.0
        %1693 = vmatprep.subr.mxu0 0.0
        %1694 = vmatpush1.xpose.msra.mxu0 0.0
        %1695 = vmatprep.subr.mxu0 0.0
        %1696 = vmatpush1.xpose.msra.mxu0 0.0
        %1697 = vmatprep.subr.mxu0 0.0
        %1698 = vmatpush1.xpose.msra.mxu0 0.0
        %1699 = vmatprep.subr.mxu0 0.0
        %1700 = vmatpush1.xpose.msra.mxu0 0.0
        %1701 = vmatprep.subr.mxu0 0.0
        %1702 = vmatpush1.xpose.msra.mxu0 0.0
        %1703 = vmatprep.subr.mxu0 0.0
        %1704 = vmatpush1.xpose.msra.mxu0 0.0
        %1705 = vmatprep.subr.mxu0 0.0
        %1706 = vmatpush1.xpose.msra.mxu0 0.0
        %1707 = vmatprep.subr.mxu0 0.0
        %1708 = vmatpush1.xpose.msra.mxu0 0.0
        %1709 = vmatprep.subr.mxu0 0.0
        %1710 = vmatpush1.xpose.msra.mxu0 0.0
        %1711 = vmatprep.subr.mxu0 0.0
        %1712 = vmatpush1.xpose.msra.mxu0 0.0
        %1713 = vmatprep.mubr.f32.mxu0 0.0
        %1714 = vmatmul.mubr.f32.gmra.mrb[0].mxu0 %v1642
        %v1715 = vpop.f32.mrb[0].mxu0
        %v1716 = vadd.f32 %v1647, %v1715
        %v1717 = vpop.f32.mrb[0].mxu0
        %1718 = vdwg.mxu0
        %1719 = vst [vmem:[%s285] sm:$0xff] %v1716
        %s1720 = sand.u32 %s195, 1
        %s1721 = scalar_lea.sflag [#allocation3], %s1720
        %s1722 = sand.u32 %s195, 1
        %s1723 = smul.addr %s1722, 8
        %s1724 = scalar_lea.vmem [#allocation2], %s1723
        // Predicated region
        $region49: #{tpu_custom_call.1} parent=47 // pred_check
          %p1725 = pneg %p205
        $region50: #{tpu_custom_call.1} parent=47 // pred_check_branch
          %1727 = sbr.rel (%p1725) target = $region52
        $region51: #{tpu_custom_call.1} parent=47 // pred_region
          %s1729 = ssub.s32 128, 128
          %1730 = vsyncadd %s1721, %s1729
          %s1731 = sadd.s32 %s26, %s25
          %s1732 = smul.addr %s1731, 128
          %s1733 = scalar_lea.hbm %s7, %s1732
          %s1735 = sshll.u32 %s1724, 4
          %s1736 = int_to_ptr.vmem [resolvable:$true] %s1735
          %1738 = dma.vmem_to_hbm [thread:$0]  %s1736, 128, %s1733, %s1721
        $region52: #{tpu_custom_call.1} parent=47 // pred_fallthru
          _
      $region48: #{tpu_custom_call.1} parent=5 // pred_fallthru
        _
      %p1739 = scmp.le.s32.totalorder 2, %s16
      // Predicated region
      $region53: #{tpu_custom_call.1} parent=5 // pred_check
        %p1740 = pneg %p1739
      $region54: #{tpu_custom_call.1} parent=5 // pred_check_branch
        %1742 = sbr.rel (%p1740) target = $region56
      $region55: #{tpu_custom_call.1} parent=5 // pred_region
        %s1743 = ssub.s32 %s16, 2
        // Predicated region
        $region57: #{tpu_custom_call.1} parent=55 // pred_check
          %p1744 = pneg %p211
        $region58: #{tpu_custom_call.1} parent=55 // pred_check_branch
          %1746 = sbr.rel (%p1744) target = $region60
        $region59: #{tpu_custom_call.1} parent=55 // pred_region
          %s1747 = sand.u32 %s196, 1
          %s1748 = scalar_lea.sflag [#allocation3], %s1747
          %s1749 = sand.u32 %s196, 1
          %s1750 = smul.addr %s1749, 8
          %s1751 = scalar_lea.vmem [#allocation2], %s1750
          %1752 = dma.done %s1748, 128
        $region60: #{tpu_custom_call.1} parent=55 // pred_fallthru
          _
      $region56: #{tpu_custom_call.1} parent=5 // pred_fallthru
        _
    $region6: #{tpu_custom_call.1} parent=1 // loop_footer
      %s20 = sadd.s32 1, %s16
    $region7: #{tpu_custom_call.1} parent=1 // loop_footer_branch
      %15 = sbr.rel target = $region3
    $region8: #{tpu_custom_call.1} parent=1 // loop_exit
      _
    %1753 = vsyncpa [#allocation3], 1
    %s1754 = scalar_lea.sflag [#allocation3], 1
    %1755 = vsyncpa %s1754, 1

</llo_original>
